<compile_context>
chip_gen: v7x
topology: tpu7x:2x2x1
jax: 0.10.0
libtpu: 0.0.40
codegen_flags: <defaults>
</compile_context>

<pallas_src>
import numpy as np
import jax
import jax.numpy as jnp
from jax import lax
from jax.experimental import pallas as pl
from jax.experimental.pallas import tpu as pltpu

_LOG_EPS = 1e-30     # guards log()/reciprocal of underflowed probability mass
_NEG_BIAS = -1e30    # bias for padded class lanes -> exp() == 0 in every softmax


# -----------------------------------------------------------------------------
# Fused kernel (one batch tile per grid step):
#   scalar_ref  : SMEM f32[6] = [ce_weight, alpha, beta, T, warmup_factor, 1/B]
#   x_ref       : VMEM bf16[TB, D]
#   w_ref       : VMEM bf16[D, 2*C_pad]   (teacher half | student half, zero padded)
#   b_ref       : VMEM f32 [1, 2*C_pad]   (padded lanes = -1e30)
#   y_ref       : VMEM i32 [TB, 1]        (-1 marks padded batch rows)
#   partial_ref : VMEM f32 [1, 8, 128]    (per-tile partial loss, broadcast-filled)
#   s_logit_ref : VMEM f32 [TB, C_pad]    (lane-dense padded student logits)
# -----------------------------------------------------------------------------
def _dkd_fused_kernel(scalar_ref, x_ref, w_ref, b_ref, y_ref,
                      partial_ref, s_logit_ref):
    ce_weight = scalar_ref[0]
    alpha = scalar_ref[1]
    beta = scalar_ref[2]
    temperature = scalar_ref[3]
    warmup_factor = scalar_ref[4]
    inv_b = scalar_ref[5]

    # Single fused MXU pass over x for BOTH heads (bf16 operands, f32 accumulate).
    logits = jnp.dot(x_ref[...], w_ref[...], preferred_element_type=jnp.float32)
    logits = logits + b_ref[...]                     # one bias add; pads get -1e30

    cp = logits.shape[1] // 2                        # per-head lane width (>=128)
    t = logits[:, :cp]                               # teacher, lane-aligned slice
    s = logits[:, cp:]                               # student, lane-aligned slice

    s_logit_ref[...] = s                             # lane-dense store

    tb_rows = s.shape[0]
    y = y_ref[...]                                   # [TB, 1] int32 (-1 = padded row)
    cls = lax.broadcasted_iota(jnp.int32, (tb_rows, cp), 1)
    gt_mask = (cls == y).astype(jnp.float32)         # one-hot (all-zero for padded rows)
    row_valid = (y >= 0).astype(jnp.float32)         # [TB, 1]
    other_mask = (1.0 - gt_mask) * row_valid         # padded class lanes have p == 0 anyway

    def log_softmax(z):
        z = z - jnp.max(z, axis=1, keepdims=True)
        return z - jnp.log(jnp.sum(jnp.exp(z), axis=1, keepdims=True))

    def safe_log(p):
        return jnp.log(jnp.maximum(p, _LOG_EPS))

    # ---- cross entropy: sum over this tile's valid rows (mean taken via inv_b) ----
    ce_sum = -jnp.sum(log_softmax(s) * gt_mask)

    # ---- DKD: one tempered softmax per network; NCKD derived from ps/pt ----
    inv_t = 1.0 / temperature
    t_sq = temperature * temperature
    log_ps = log_softmax(s * inv_t)
    log_pt = log_softmax(t * inv_t)
    ps = jnp.exp(log_ps)
    pt = jnp.exp(log_pt)

    ps_gt = jnp.sum(ps * gt_mask, axis=1, keepdims=True)
    ps_ot = jnp.sum(ps * other_mask, axis=1, keepdims=True)
    pt_gt = jnp.sum(pt * gt_mask, axis=1, keepdims=True)
    pt_ot = jnp.sum(pt * other_mask, axis=1, keepdims=True)

    # TCKD: KL of the binary (target vs rest) distributions.
    tckd_sum = (jnp.sum(pt_gt * (safe_log(pt_gt) - safe_log(ps_gt))) +
                jnp.sum(pt_ot * (safe_log(pt_ot) - safe_log(ps_ot))))

    # NCKD derived algebraically (equivalent to softmax(logits/T - 1000*gt) up to exp(-1000/T)):
    #   pt2_j = pt_j / pt_ot on non-target lanes, 0 elsewhere.
    pt2 = pt * other_mask * pl.reciprocal(jnp.maximum(pt_ot, _LOG_EPS), approx=True)
    log_ratio = (log_pt - log_ps) - (safe_log(pt_ot) - safe_log(ps_ot))
    nckd_sum = jnp.sum(pt2 * log_ratio)

    partial = (ce_weight * ce_sum +
               warmup_factor * (alpha * tckd_sum + beta * nckd_sum) * t_sq) * inv_b
    partial_ref[...] = jnp.broadcast_to(partial, partial_ref.shape).astype(jnp.float32)


def dkd_forward(scalars, x_pad, w_cat, b_cat, y_pad, *, tb):
    """Fused pallas_call over batch tiles -> (per-tile partial losses, padded s_logit)."""
    b_pad, d = x_pad.shape
    co = w_cat.shape[1]
    cp = co // 2
    num_tiles = b_pad // tb

    cost = pl.CostEstimate(
        flops=2 * b_pad * d * co + 64 * b_pad * cp,
        transcendentals=6 * b_pad * cp,
        bytes_accessed=(x_pad.size * 2 + w_cat.size * 2 + b_cat.size * 4 +
                        y_pad.size * 4 + b_pad * cp * 4 + num_tiles * 8 * 128 * 4),
    )

    # Explicit VMEM budget (v7x only has 64 MiB physical; default scoped limit 32 MiB).
    x_tile_bytes = tb * d * 2
    w_bytes = d * co * 2
    footprint = 2 * x_tile_bytes + 2 * w_bytes + 2 * (tb * cp * 4) + (1 << 20)
    vmem_limit = int(min(48 * 1024 * 1024, max(32 * 1024 * 1024, 3 * footprint)))
    # TODO(synk): for large D add a K-tiled reduction grid (reduction axis last,
    # "arbitrary", f32 accumulator scratch) so W streams instead of living in VMEM.

    partials, s_logit_pad = pl.pallas_call(
        _dkd_fused_kernel,
        out_shape=(jax.ShapeDtypeStruct((num_tiles, 8, 128), jnp.float32),
                   jax.ShapeDtypeStruct((b_pad, cp), jnp.float32)),
        grid=(num_tiles,),
        in_specs=[
            pl.BlockSpec(memory_space=pltpu.MemorySpace.SMEM),          # scalars (whole)
            pl.BlockSpec((tb, d), lambda g: (g, 0)),                    # x tile (bf16)
            pl.BlockSpec((d, co), lambda g: (0, 0)),                    # fused W (resident)
            pl.BlockSpec((1, co), lambda g: (0, 0)),                    # fused bias
            pl.BlockSpec((tb, 1), lambda g: (g, 0)),                    # labels tile
        ],
        out_specs=(pl.BlockSpec((1, 8, 128), lambda g: (g, 0, 0)),      # per-tile partial
                   pl.BlockSpec((tb, cp), lambda g: (g, 0))),           # lane-dense logits
        compiler_params=pltpu.CompilerParams(
            dimension_semantics=("parallel",),
            vmem_limit_bytes=vmem_limit),
        cost_estimate=cost,
    )(scalars, x_pad, w_cat, b_cat, y_pad)
    return partials, s_logit_pad


# -----------------------------------------------------------------------------
# DKDDistiller (forward semantics only)
# -----------------------------------------------------------------------------
class DKDDistillerPallas:
    def __init__(self, teacher_params, student_params, ce_weight=1.0,
                 alpha=1.0, beta=1.0, temperature=4.0, warmup=5):
        tw, tb = teacher_params          # W [C, D], b [C]
        sw, sb = student_params
        c, d = tw.shape
        cp = max(128, ((c + 127) // 128) * 128)   # per-head lane padding
        co = 2 * cp
        # Fused, pre-transposed, zero-padded weight: [D, 2*C_pad] -> ONE MXU pass.
        w = jnp.zeros((d, co), jnp.float32)
        w = w.at[:, :c].set(jnp.asarray(tw, jnp.float32).T)
        w = w.at[:, cp:cp + c].set(jnp.asarray(sw, jnp.float32).T)
        self.w_cat = w.astype(jnp.bfloat16)
        # Fused bias; padded class lanes get -1e30 so softmaxes ignore them.
        b = jnp.full((1, co), _NEG_BIAS, jnp.float32)
        b = b.at[0, :c].set(jnp.asarray(tb, jnp.float32))
        b = b.at[0, cp:cp + c].set(jnp.asarray(sb, jnp.float32))
        self.b_cat = b
        self.num_classes = c
        self.c_pad = cp
        self.ce_weight = float(ce_weight)
        self.alpha = float(alpha)
        self.beta = float(beta)
        self.temperature = float(temperature)
        self.warmup = warmup
        self.batch_tile = 16             # sublane-friendly bf16 batch tile

    def forward(self, x, y, epoch=1):
        b = x.shape[0]
        x_flat = x.reshape(b, -1).astype(jnp.float32)
        d = x_flat.shape[1]
        tb_tile = self.batch_tile
        b_pad = ((b + tb_tile - 1) // tb_tile) * tb_tile
        # Pad batch (padded rows: x = 0, y = -1 -> fully masked out of the loss).
        x_pad = jnp.zeros((b_pad, d), jnp.bfloat16).at[:b].set(x_flat.astype(jnp.bfloat16))
        # TODO(synk): labels could live in SMEM / scalar-prefetch; kept as a [B,1] VMEM
        # block since the cost is one near-empty tile and the vector compare is trivial.
        y_pad = jnp.full((b_pad, 1), -1, jnp.int32).at[:b, 0].set(y.astype(jnp.int32))

        warmup_factor = min(float(epoch) / self.warmup, 1.0)
        # Epoch-dependent scalars go in as SMEM data -> no recompile per epoch.
        scalars = jnp.array([self.ce_weight, self.alpha, self.beta,
                             self.temperature, warmup_factor, 1.0 / b], jnp.float32)

        partials, s_logit_pad = dkd_forward(scalars, x_pad, self.w_cat, self.b_cat,
                                            y_pad, tb=tb_tile)
        total_loss = jnp.sum(partials[:, 0, 0])
        s_logit = s_logit_pad[:b, :self.num_classes]
        return total_loss, s_logit
    # TODO(synk): train_distillation / evaluate are host-side training loops
    # (optimizer, data loaders); the fused kernel is forward-only (no custom_vjp).


# -----------------------------------------------------------------------------
# Pure-JAX f32 reference for a sanity check
# -----------------------------------------------------------------------------
def _reference_loss(x, y, tw, tb, sw, sb, ce_weight, alpha, beta, T, wf):
    B = x.shape[0]
    xf = x.reshape(B, -1).astype(jnp.float32)
    t = xf @ tw.T + tb
    s = xf @ sw.T + sb
    C = s.shape[1]
    ce = -jnp.mean(jax.nn.log_softmax(s, axis=1)[jnp.arange(B), y])
    gt = jax.nn.one_hot(y, C, dtype=jnp.float32)
    other = 1.0 - gt
    ps = jax.nn.softmax(s / T, axis=1)
    pt = jax.nn.softmax(t / T, axis=1)
    b_s = jnp.stack([jnp.sum(ps * gt, 1), jnp.sum(ps * other, 1)], axis=1)
    b_t = jnp.stack([jnp.sum(pt * gt, 1), jnp.sum(pt * other, 1)], axis=1)
    tckd = jnp.sum(b_t * (jnp.log(b_t) - jnp.log(b_s))) * T * T / B
    log_ps2 = jax.nn.log_softmax(s / T - 1000.0 * gt, axis=1)
    log_pt2 = jax.nn.log_softmax(t / T - 1000.0 * gt, axis=1)
    pt2 = jnp.exp(log_pt2)
    nckd = jnp.sum(pt2 * (log_pt2 - log_ps2)) * T * T / B
    return ce_weight * ce + wf * (alpha * tckd + beta * nckd)


if __name__ == "__main__":
    key = jax.random.PRNGKey(0)
    kx, ky, k1, k2, k3, k4, kx2, ky2 = jax.random.split(key, 8)

    B, C_in, H, W = 2, 4, 16, 16      # NCHW input, like PyTorch
    num_classes = 10
    D = C_in * H * W                  # 1024

    x = jax.random.normal(kx, (B, C_in, H, W), dtype=jnp.float32)
    y = jax.random.randint(ky, (B,), 0, num_classes, dtype=jnp.int32)

    # deterministic synthetic teacher / student linear heads
    teacher_w = 0.05 * jax.random.normal(k1, (num_classes, D), dtype=jnp.float32)
    teacher_b = 0.01 * jax.random.normal(k2, (num_classes,), dtype=jnp.float32)
    student_w = 0.05 * jax.random.normal(k3, (num_classes, D), dtype=jnp.float32)
    student_b = 0.01 * jax.random.normal(k4, (num_classes,), dtype=jnp.float32)

    distiller = DKDDistillerPallas(
        (teacher_w, teacher_b), (student_w, student_b),
        ce_weight=1.0, alpha=1.0, beta=1.0, temperature=4.0, warmup=5)

    epoch = 2
    total_loss, s_logit = distiller.forward(x, y, epoch=epoch)
    total_loss = jax.block_until_ready(total_loss)
    s_logit = jax.block_until_ready(s_logit)

    wf = min(float(epoch) / distiller.warmup, 1.0)
    ref = _reference_loss(x, y, teacher_w, teacher_b, student_w, student_b,
                          1.0, 1.0, 1.0, 4.0, wf)
    ref = jax.block_until_ready(ref)
    ref_slogit = x.reshape(B, -1) @ student_w.T + student_b

    assert s_logit.shape == (B, num_classes)
    assert bool(jnp.isfinite(total_loss))
    # bf16 matmul operands -> slightly looser tolerance vs the f32 reference
    np.testing.assert_allclose(np.asarray(s_logit), np.asarray(ref_slogit),
                               rtol=3e-2, atol=3e-2)
    np.testing.assert_allclose(np.asarray(total_loss), np.asarray(ref),
                               rtol=3e-2, atol=3e-2)

    # different epoch -> different warmup factor via the SMEM scalar path (no recompile)
    total_loss5, _ = distiller.forward(x, y, epoch=5)
    total_loss5 = jax.block_until_ready(total_loss5)
    ref5 = _reference_loss(x, y, teacher_w, teacher_b, student_w, student_b,
                           1.0, 1.0, 1.0, 4.0, 1.0)
    np.testing.assert_allclose(np.asarray(total_loss5), np.asarray(ref5),
                               rtol=3e-2, atol=3e-2)

    # larger batch exercises the multi-tile batch grid + padded-row masking
    B2 = 40
    x2 = jax.random.normal(kx2, (B2, C_in, H, W), dtype=jnp.float32)
    y2 = jax.random.randint(ky2, (B2,), 0, num_classes, dtype=jnp.int32)
    loss2, slog2 = distiller.forward(x2, y2, epoch=3)
    loss2 = jax.block_until_ready(loss2)
    ref2 = _reference_loss(x2, y2, teacher_w, teacher_b, student_w, student_b,
                           1.0, 1.0, 1.0, 4.0, min(3.0 / 5.0, 1.0))
    ref2_slogit = x2.reshape(B2, -1) @ student_w.T + student_b
    np.testing.assert_allclose(np.asarray(slog2), np.asarray(ref2_slogit),
                               rtol=3e-2, atol=3e-2)
    np.testing.assert_allclose(np.asarray(loss2), np.asarray(ref2),
                               rtol=3e-2, atol=3e-2)

    print("KERNEL_OK")
</pallas_src>

<mosaic_0001>
module attributes {stable_mosaic.version = 11 : i64} {
  func.func @_dkd_fused_kernel(%arg0: i32, %arg1: memref<6xf32, #tpu.memory_space<smem>>, %arg2: memref<16x1024xbf16, #tpu.memory_space<vmem>>, %arg3: memref<1024x256xbf16, #tpu.memory_space<vmem>>, %arg4: memref<1x256xf32, #tpu.memory_space<vmem>>, %arg5: memref<16x1xi32, #tpu.memory_space<vmem>>, %arg6: memref<1x8x128xf32, #tpu.memory_space<vmem>>, %arg7: memref<16x128xf32, #tpu.memory_space<vmem>>) attributes {dimension_semantics = [#tpu.dimension_semantics<parallel>], iteration_bounds = array<i64: 1>, scalar_prefetch = 0 : i64, scratch_operands = 0 : i64, tpu.core_type = #tpu.core_type<tc>, window_params = [{transform_indices = @transform_0, window_bounds = array<i64: 6>}, {transform_indices = @transform_1, window_bounds = array<i64: 16, 1024>}, {pipeline_mode = #tpu.pipeline_mode<synchronous>, transform_indices = @transform_2, window_bounds = array<i64: 1024, 256>}, {pipeline_mode = #tpu.pipeline_mode<synchronous>, transform_indices = @transform_3, window_bounds = array<i64: 1, 256>}, {transform_indices = @transform_4, window_bounds = array<i64: 16, 1>}, {transform_indices = @transform_5, window_bounds = array<i64: 1, 8, 128>}, {transform_indices = @transform_6, window_bounds = array<i64: 16, 128>}]} {
    %c0 = arith.constant 0 : index
    %0 = memref.load %arg1[%c0] : memref<6xf32, #tpu.memory_space<smem>>
    %c1 = arith.constant 1 : index
    %1 = memref.load %arg1[%c1] : memref<6xf32, #tpu.memory_space<smem>>
    %c2 = arith.constant 2 : index
    %2 = memref.load %arg1[%c2] : memref<6xf32, #tpu.memory_space<smem>>
    %c3 = arith.constant 3 : index
    %3 = memref.load %arg1[%c3] : memref<6xf32, #tpu.memory_space<smem>>
    %c4 = arith.constant 4 : index
    %4 = memref.load %arg1[%c4] : memref<6xf32, #tpu.memory_space<smem>>
    %c5 = arith.constant 5 : index
    %5 = memref.load %arg1[%c5] : memref<6xf32, #tpu.memory_space<smem>>
    %c0_0 = arith.constant 0 : index
    %c0_1 = arith.constant 0 : index
    %6 = vector.load %arg2[%c0_0, %c0_1] : memref<16x1024xbf16, #tpu.memory_space<vmem>>, vector<16x1024xbf16>
    %c0_2 = arith.constant 0 : index
    %c0_3 = arith.constant 0 : index
    %7 = vector.load %arg3[%c0_2, %c0_3] : memref<1024x256xbf16, #tpu.memory_space<vmem>>, vector<1024x256xbf16>
    %cst = arith.constant dense<0.000000e+00> : vector<16x256xf32>
    %8 = tpu.matmul %6, %7, %cst {dimension_numbers = #tpu.dot_dimension_numbers<[1], [0], [0], [1], [0, 0, 1, 1], [], []>} : vector<16x1024xbf16>, vector<1024x256xbf16>, vector<16x256xf32> -> vector<16x256xf32>
    %c0_4 = arith.constant 0 : index
    %c0_5 = arith.constant 0 : index
    %9 = vector.load %arg4[%c0_4, %c0_5] : memref<1x256xf32, #tpu.memory_space<vmem>>, vector<1x256xf32>
    %10 = vector.broadcast %9 : vector<1x256xf32> to vector<16x256xf32>
    %11 = arith.addf %8, %10 : vector<16x256xf32>
    %12 = vector.extract_strided_slice %11 {offsets = [0, 0], sizes = [16, 128], strides = [1, 1]} : vector<16x256xf32> to vector<16x128xf32>
    %13 = vector.extract_strided_slice %11 {offsets = [0, 128], sizes = [16, 128], strides = [1, 1]} : vector<16x256xf32> to vector<16x128xf32>
    %c0_6 = arith.constant 0 : index
    %c0_7 = arith.constant 0 : index
    %14 = vector.load %arg7[%c0_6, %c0_7] : memref<16x128xf32, #tpu.memory_space<vmem>>, vector<16x128xf32>
    tpu.vector_store %arg7[%c0_6, %c0_7], %13 {strides = array<i32>} : memref<16x128xf32, #tpu.memory_space<vmem>>, vector<16x128xf32>,
    %c0_8 = arith.constant 0 : index
    %c0_9 = arith.constant 0 : index
    %15 = vector.load %arg5[%c0_8, %c0_9] : memref<16x1xi32, #tpu.memory_space<vmem>>, vector<16x1xi32>
    %16 = tpu.iota {dimensions = array<i32: 1>} : vector<16x128xi32>
    %17 = vector.broadcast %15 : vector<16x1xi32> to vector<16x128xi32>
    %18 = arith.cmpi eq, %16, %17 : vector<16x128xi32>
    %19 = arith.extui %18 : vector<16x128xi1> to vector<16x128xi32>
    %20 = arith.sitofp %19 : vector<16x128xi32> to vector<16x128xf32>
    %c0_i32 = arith.constant 0 : i32
    %21 = vector.broadcast %c0_i32 : i32 to vector<16x1xi32>
    %22 = arith.cmpi sge, %15, %21 : vector<16x1xi32>
    %23 = arith.extui %22 : vector<16x1xi1> to vector<16x1xi32>
    %24 = arith.sitofp %23 : vector<16x1xi32> to vector<16x1xf32>
    %cst_10 = arith.constant 1.000000e+00 : f32
    %25 = vector.broadcast %cst_10 : f32 to vector<16x128xf32>
    %26 = arith.subf %25, %20 : vector<16x128xf32>
    %27 = vector.broadcast %24 : vector<16x1xf32> to vector<16x128xf32>
    %28 = arith.mulf %26, %27 : vector<16x128xf32>
    %cst_11 = arith.constant dense<0xFF800000> : vector<16xf32>
    %29 = vector.multi_reduction <maximumf>, %13, %cst_11 [1] : vector<16x128xf32> to vector<16xf32>
    %30 = vector.shape_cast %29 : vector<16xf32> to vector<16x1xf32>
    %31 = vector.broadcast %30 : vector<16x1xf32> to vector<16x128xf32>
    %32 = arith.subf %13, %31 : vector<16x128xf32>
    %33 = math.exp %32 : vector<16x128xf32>
    %cst_12 = arith.constant dense<0.000000e+00> : vector<16xf32>
    %34 = vector.multi_reduction <add>, %33, %cst_12 [1] : vector<16x128xf32> to vector<16xf32>
    %35 = vector.shape_cast %34 : vector<16xf32> to vector<16x1xf32>
    %36 = math.log %35 : vector<16x1xf32>
    %37 = vector.broadcast %36 : vector<16x1xf32> to vector<16x128xf32>
    %38 = arith.subf %32, %37 : vector<16x128xf32>
    %39 = arith.mulf %38, %20 : vector<16x128xf32>
    %40 = vector.shape_cast %39 : vector<16x128xf32> to vector<1x16x128xf32>
    %cst_13 = arith.constant dense<0.000000e+00> : vector<1xf32>
    %41 = vector.multi_reduction <add>, %40, %cst_13 [1, 2] : vector<1x16x128xf32> to vector<1xf32>
    %42 = vector.shape_cast %41 : vector<1xf32> to vector<1x1x1xf32>
    %43 = vector.extract %42[0, 0, 0] : f32 from vector<1x1x1xf32>
    %cst_14 = arith.constant 0.000000e+00 : f32
    %44 = arith.subf %cst_14, %43 : f32
    %cst_15 = arith.constant 1.000000e+00 : f32
    %45 = arith.divf %cst_15, %3 : f32
    %46 = arith.mulf %3, %3 : f32
    %47 = vector.broadcast %45 : f32 to vector<16x128xf32>
    %48 = arith.mulf %13, %47 : vector<16x128xf32>
    %cst_16 = arith.constant dense<0xFF800000> : vector<16xf32>
    %49 = vector.multi_reduction <maximumf>, %48, %cst_16 [1] : vector<16x128xf32> to vector<16xf32>
    %50 = vector.shape_cast %49 : vector<16xf32> to vector<16x1xf32>
    %51 = vector.broadcast %50 : vector<16x1xf32> to vector<16x128xf32>
    %52 = arith.subf %48, %51 : vector<16x128xf32>
    %53 = math.exp %52 : vector<16x128xf32>
    %cst_17 = arith.constant dense<0.000000e+00> : vector<16xf32>
    %54 = vector.multi_reduction <add>, %53, %cst_17 [1] : vector<16x128xf32> to vector<16xf32>
    %55 = vector.shape_cast %54 : vector<16xf32> to vector<16x1xf32>
    %56 = math.log %55 : vector<16x1xf32>
    %57 = vector.broadcast %56 : vector<16x1xf32> to vector<16x128xf32>
    %58 = arith.subf %52, %57 : vector<16x128xf32>
    %59 = vector.broadcast %45 : f32 to vector<16x128xf32>
    %60 = arith.mulf %12, %59 : vector<16x128xf32>
    %cst_18 = arith.constant dense<0xFF800000> : vector<16xf32>
    %61 = vector.multi_reduction <maximumf>, %60, %cst_18 [1] : vector<16x128xf32> to vector<16xf32>
    %62 = vector.shape_cast %61 : vector<16xf32> to vector<16x1xf32>
    %63 = vector.broadcast %62 : vector<16x1xf32> to vector<16x128xf32>
    %64 = arith.subf %60, %63 : vector<16x128xf32>
    %65 = math.exp %64 : vector<16x128xf32>
    %cst_19 = arith.constant dense<0.000000e+00> : vector<16xf32>
    %66 = vector.multi_reduction <add>, %65, %cst_19 [1] : vector<16x128xf32> to vector<16xf32>
    %67 = vector.shape_cast %66 : vector<16xf32> to vector<16x1xf32>
    %68 = math.log %67 : vector<16x1xf32>
    %69 = vector.broadcast %68 : vector<16x1xf32> to vector<16x128xf32>
    %70 = arith.subf %64, %69 : vector<16x128xf32>
    %71 = math.exp %58 : vector<16x128xf32>
    %72 = math.exp %70 : vector<16x128xf32>
    %73 = arith.mulf %71, %20 : vector<16x128xf32>
    %cst_20 = arith.constant dense<0.000000e+00> : vector<16xf32>
    %74 = vector.multi_reduction <add>, %73, %cst_20 [1] : vector<16x128xf32> to vector<16xf32>
    %75 = vector.shape_cast %74 : vector<16xf32> to vector<16x1xf32>
    %76 = arith.mulf %71, %28 : vector<16x128xf32>
    %cst_21 = arith.constant dense<0.000000e+00> : vector<16xf32>
    %77 = vector.multi_reduction <add>, %76, %cst_21 [1] : vector<16x128xf32> to vector<16xf32>
    %78 = vector.shape_cast %77 : vector<16xf32> to vector<16x1xf32>
    %79 = arith.mulf %72, %20 : vector<16x128xf32>
    %cst_22 = arith.constant dense<0.000000e+00> : vector<16xf32>
    %80 = vector.multi_reduction <add>, %79, %cst_22 [1] : vector<16x128xf32> to vector<16xf32>
    %81 = vector.shape_cast %80 : vector<16xf32> to vector<16x1xf32>
    %82 = arith.mulf %72, %28 : vector<16x128xf32>
    %cst_23 = arith.constant dense<0.000000e+00> : vector<16xf32>
    %83 = vector.multi_reduction <add>, %82, %cst_23 [1] : vector<16x128xf32> to vector<16xf32>
    %84 = vector.shape_cast %83 : vector<16xf32> to vector<16x1xf32>
    %cst_24 = arith.constant 1.000000e-30 : f32
    %85 = vector.broadcast %cst_24 : f32 to vector<16x1xf32>
    %86 = arith.maximumf %81, %85 : vector<16x1xf32>
    %87 = math.log %86 : vector<16x1xf32>
    %cst_25 = arith.constant 1.000000e-30 : f32
    %88 = vector.broadcast %cst_25 : f32 to vector<16x1xf32>
    %89 = arith.maximumf %75, %88 : vector<16x1xf32>
    %90 = math.log %89 : vector<16x1xf32>
    %91 = arith.subf %87, %90 : vector<16x1xf32>
    %92 = arith.mulf %81, %91 : vector<16x1xf32>
    %93 = vector.shape_cast %92 : vector<16x1xf32> to vector<1x16x1xf32>
    %cst_26 = arith.constant dense<0.000000e+00> : vector<1xf32>
    %94 = vector.multi_reduction <add>, %93, %cst_26 [1, 2] : vector<1x16x1xf32> to vector<1xf32>
    %95 = vector.shape_cast %94 : vector<1xf32> to vector<1x1x1xf32>
    %96 = vector.extract %95[0, 0, 0] : f32 from vector<1x1x1xf32>
    %cst_27 = arith.constant 1.000000e-30 : f32
    %97 = vector.broadcast %cst_27 : f32 to vector<16x1xf32>
    %98 = arith.maximumf %84, %97 : vector<16x1xf32>
    %99 = math.log %98 : vector<16x1xf32>
    %cst_28 = arith.constant 1.000000e-30 : f32
    %100 = vector.broadcast %cst_28 : f32 to vector<16x1xf32>
    %101 = arith.maximumf %78, %100 : vector<16x1xf32>
    %102 = math.log %101 : vector<16x1xf32>
    %103 = arith.subf %99, %102 : vector<16x1xf32>
    %104 = arith.mulf %84, %103 : vector<16x1xf32>
    %105 = vector.shape_cast %104 : vector<16x1xf32> to vector<1x16x1xf32>
    %cst_29 = arith.constant dense<0.000000e+00> : vector<1xf32>
    %106 = vector.multi_reduction <add>, %105, %cst_29 [1, 2] : vector<1x16x1xf32> to vector<1xf32>
    %107 = vector.shape_cast %106 : vector<1xf32> to vector<1x1x1xf32>
    %108 = vector.extract %107[0, 0, 0] : f32 from vector<1x1x1xf32>
    %109 = arith.addf %96, %108 : f32
    %110 = arith.mulf %72, %28 : vector<16x128xf32>
    %cst_30 = arith.constant 1.000000e-30 : f32
    %111 = vector.broadcast %cst_30 : f32 to vector<16x1xf32>
    %112 = arith.maximumf %84, %111 : vector<16x1xf32>
    %113 = tpu.reciprocal %112 {approx = true} : vector<16x1xf32> -> vector<16x1xf32>
    %114 = vector.broadcast %113 : vector<16x1xf32> to vector<16x128xf32>
    %115 = arith.mulf %110, %114 : vector<16x128xf32>
    %116 = arith.subf %70, %58 : vector<16x128xf32>
    %cst_31 = arith.constant 1.000000e-30 : f32
    %117 = vector.broadcast %cst_31 : f32 to vector<16x1xf32>
    %118 = arith.maximumf %84, %117 : vector<16x1xf32>
    %119 = math.log %118 : vector<16x1xf32>
    %cst_32 = arith.constant 1.000000e-30 : f32
    %120 = vector.broadcast %cst_32 : f32 to vector<16x1xf32>
    %121 = arith.maximumf %78, %120 : vector<16x1xf32>
    %122 = math.log %121 : vector<16x1xf32>
    %123 = arith.subf %119, %122 : vector<16x1xf32>
    %124 = vector.broadcast %123 : vector<16x1xf32> to vector<16x128xf32>
    %125 = arith.subf %116, %124 : vector<16x128xf32>
    %126 = arith.mulf %115, %125 : vector<16x128xf32>
    %127 = vector.shape_cast %126 : vector<16x128xf32> to vector<1x16x128xf32>
    %cst_33 = arith.constant dense<0.000000e+00> : vector<1xf32>
    %128 = vector.multi_reduction <add>, %127, %cst_33 [1, 2] : vector<1x16x128xf32> to vector<1xf32>
    %129 = vector.shape_cast %128 : vector<1xf32> to vector<1x1x1xf32>
    %130 = vector.extract %129[0, 0, 0] : f32 from vector<1x1x1xf32>
    %131 = arith.mulf %0, %44 : f32
    %132 = arith.mulf %1, %109 : f32
    %133 = arith.mulf %2, %130 : f32
    %134 = arith.addf %132, %133 : f32
    %135 = arith.mulf %4, %134 : f32
    %136 = arith.mulf %135, %46 : f32
    %137 = arith.addf %131, %136 : f32
    %138 = arith.mulf %137, %5 : f32
    %139 = vector.broadcast %138 : f32 to vector<1x8x128xf32>
    %c0_34 = arith.constant 0 : index
    %c0_35 = arith.constant 0 : index
    %c0_36 = arith.constant 0 : index
    %140 = vector.load %arg6[%c0_34, %c0_35, %c0_36] : memref<1x8x128xf32, #tpu.memory_space<vmem>>, vector<1x8x128xf32>
    tpu.vector_store %arg6[%c0_34, %c0_35, %c0_36], %139 {strides = array<i32>} : memref<1x8x128xf32, #tpu.memory_space<vmem>>, vector<1x8x128xf32>,
    return
  }
  func.func @transform_0(%arg0: i32) -> i32 {
    %c0_i32 = arith.constant 0 : i32
    %c0_i32_0 = arith.constant 0 : i32
    return %c0_i32 : i32
  }
  func.func @transform_1(%arg0: i32) -> (i32, i32) {
    %c0_i32 = arith.constant 0 : i32
    %c0_i32_0 = arith.constant 0 : i32
    return %arg0, %c0_i32 : i32, i32
  }
  func.func @transform_2(%arg0: i32) -> (i32, i32) {
    %c0_i32 = arith.constant 0 : i32
    %c0_i32_0 = arith.constant 0 : i32
    %c0_i32_1 = arith.constant 0 : i32
    return %c0_i32, %c0_i32_0 : i32, i32
  }
  func.func @transform_3(%arg0: i32) -> (i32, i32) {
    %c0_i32 = arith.constant 0 : i32
    %c0_i32_0 = arith.constant 0 : i32
    %c0_i32_1 = arith.constant 0 : i32
    return %c0_i32, %c0_i32_0 : i32, i32
  }
  func.func @transform_4(%arg0: i32) -> (i32, i32) {
    %c0_i32 = arith.constant 0 : i32
    %c0_i32_0 = arith.constant 0 : i32
    return %arg0, %c0_i32 : i32, i32
  }
  func.func @transform_5(%arg0: i32) -> (i32, i32, i32) {
    %c0_i32 = arith.constant 0 : i32
    %c0_i32_0 = arith.constant 0 : i32
    %c0_i32_1 = arith.constant 0 : i32
    return %arg0, %c0_i32, %c0_i32_0 : i32, i32, i32
  }
  func.func @transform_6(%arg0: i32) -> (i32, i32) {
    %c0_i32 = arith.constant 0 : i32
    %c0_i32_0 = arith.constant 0 : i32
    return %arg0, %c0_i32 : i32, i32
  }
}

</mosaic_0001>

<llo_original>
// kernel: tpu_custom_call.1
$region0: #{tpu_custom_call.1}
  #allocation0 [shape = 'u32[]', space=smem, size = 0x4, offset = 0x4, fixed_abs, tag = 'smem constant byte address 0x4 - core index']
  #allocation1 [shape = 'u32[144,128]{1,0:T(1,128)}', space=vmem, size = 0x12000, scoped, tag = 'internal scratch']
  %s0 = inlined_call_operand.vmem [shape: f32[6], index: 0, kind: input, shape index: {}]
  %s1 = inlined_call_operand.hbm [shape: bf16[16,1024], index: 1, kind: input, shape index: {}]
  %s2 = inlined_call_operand.hbm [shape: bf16[1024,256], index: 2, kind: input, shape index: {}]
  %s3 = inlined_call_operand.vmem [shape: f32[1,256], index: 3, kind: input, shape index: {}]
  %s4 = inlined_call_operand.vmem [shape: s32[16,1], index: 4, kind: input, shape index: {}]
  %s5 = inlined_call_operand.hbm [shape: f32[1,8,128], index: 5, kind: output, shape index: {0}]
  %s6 = inlined_call_operand.hbm [shape: f32[16,128], index: 6, kind: output, shape index: {1}]
  %7 = xla_tuple %s5, %s6
  %s8 = sld [smem:[#allocation0]]
  $region50: #{tpu_custom_call.1} parent=0
    _
  %s10 = ssub.s32 1, %s8
  %s11 = scalar_select 0, %s10, %s8
  $region1: #{tpu_custom_call.1} parent=0
    #allocation2 [shape = 'u8[512]{0}', space=smem, size = 0x200, scoped, tag = 'input window, operand 0, single buffered']
    #allocation3 [shape = 's32[1]{0}', space=sflag, size = 0x4, scoped, tag = 'scoped memory for tpu_custom_call.1']
    #allocation4 [shape = 's32[1]{0}', space=sflag, size = 0x4, scoped, tag = 'scoped memory for tpu_custom_call.1']
    #allocation5 [shape = 's32[1]{0}', space=sflag, size = 0x4, scoped, tag = 'scoped memory for tpu_custom_call.1']
    #allocation6 [shape = 'u8[32768]{0}', space=vmem, size = 0x8000, scoped, tag = 'input window, operand 1, single buffered']
    #allocation7 [shape = 'u8[524288]{0}', space=vmem, size = 0x80000, scoped, tag = 'input window, operand 2, single buffered']
    #allocation8 [shape = 's32[1]{0}', space=sflag, size = 0x4, scoped, tag = 'scoped memory for tpu_custom_call.1']
    #allocation9 [shape = 'u8[4096]{0}', space=vmem, size = 0x1000, scoped, tag = 'output window, operand 0, single buffered']
    #allocation10 [shape = 'u8[8192]{0}', space=vmem, size = 0x2000, scoped, tag = 'output window, operand 1, single buffered']
    #allocation11 [shape = 's32[1]{0}', space=sflag, size = 0x4, scoped, tag = 'scoped memory for tpu_custom_call.1']
    %12 = vsyncpa [#allocation5], 0
    %13 = vsyncpa [#allocation3], 0
    %14 = vsyncpa [#allocation8], 0
    %15 = vsyncpa [#allocation4], 0
    %16 = vsyncpa [#allocation11], 0
    // Predicated region
    $region2: #{tpu_custom_call.1} parent=1 // pred_check
      _
    $region3: #{tpu_custom_call.1} parent=1 // pred_check_branch
      %18 = sbr.rel (0) target = $region5
    $region4: #{tpu_custom_call.1} parent=1 // pred_region
      %s20 = ssub.s32 16, 16
      %21 = vsyncadd [#allocation5], %s20
      %s23 = sshll.u32 %s0, 4
      %s24 = int_to_ptr.vmem [resolvable:$true] %s23
      %26 = dma.vmem_to_smem %s24, 16, [#allocation2], [#allocation5]
    $region5: #{tpu_custom_call.1} parent=1 // pred_fallthru
      _
    // Predicated region
    $region6: #{tpu_custom_call.1} parent=1 // pred_check
      _
    $region7: #{tpu_custom_call.1} parent=1 // pred_check_branch
      %28 = sbr.rel (0) target = $region9
    $region8: #{tpu_custom_call.1} parent=1 // pred_region
      %s30 = ssub.s32 1024, 1024
      %31 = vsyncadd [#allocation3], %s30
      %s32 = sshll.u32 [#allocation6], 4
      %s33 = int_to_ptr.vmem [resolvable:$true] %s32
      %38 = dma.hbm_to_vmem [thread:$0]  %s1, 1024, %s33, [#allocation3], 512, 512, 32
    $region9: #{tpu_custom_call.1} parent=1 // pred_fallthru
      _
    // Predicated region
    $region10: #{tpu_custom_call.1} parent=1 // pred_check
      _
    $region11: #{tpu_custom_call.1} parent=1 // pred_check_branch
      %40 = sbr.rel (0) target = $region13
    $region12: #{tpu_custom_call.1} parent=1 // pred_region
      %s42 = ssub.s32 16384, 16384
      %43 = vsyncadd [#allocation8], %s42
      %s44 = sshll.u32 [#allocation7], 4
      %s45 = int_to_ptr.vmem [resolvable:$true] %s44
      %50 = dma.hbm_to_vmem [thread:$0]  %s2, 16384, %s45, [#allocation8], 128, 128, 8
    $region13: #{tpu_custom_call.1} parent=1 // pred_fallthru
      _
    // Predicated region
    $region14: #{tpu_custom_call.1} parent=1 // pred_check
      _
    $region15: #{tpu_custom_call.1} parent=1 // pred_check_branch
      %52 = sbr.rel (0) target = $region17
    $region16: #{tpu_custom_call.1} parent=1 // pred_region
      _
    $region17: #{tpu_custom_call.1} parent=1 // pred_fallthru
      _
    // Predicated region
    $region18: #{tpu_custom_call.1} parent=1 // pred_check
      _
    $region19: #{tpu_custom_call.1} parent=1 // pred_check_branch
      %54 = sbr.rel (0) target = $region21
    $region20: #{tpu_custom_call.1} parent=1 // pred_region
      _
    $region21: #{tpu_custom_call.1} parent=1 // pred_fallthru
      _
    // Predicated region
    $region22: #{tpu_custom_call.1} parent=1 // pred_check
      _
    $region23: #{tpu_custom_call.1} parent=1 // pred_check_branch
      %56 = sbr.rel (0) target = $region25
    $region24: #{tpu_custom_call.1} parent=1 // pred_region
      %57 = dma.done [#allocation5], 16
    $region25: #{tpu_custom_call.1} parent=1 // pred_fallthru
      _
    // Predicated region
    $region26: #{tpu_custom_call.1} parent=1 // pred_check
      _
    $region27: #{tpu_custom_call.1} parent=1 // pred_check_branch
      %59 = sbr.rel (0) target = $region29
    $region28: #{tpu_custom_call.1} parent=1 // pred_region
      %60 = dma.done [#allocation3], 1024
    $region29: #{tpu_custom_call.1} parent=1 // pred_fallthru
      _
    // Predicated region
    $region30: #{tpu_custom_call.1} parent=1 // pred_check
      _
    $region31: #{tpu_custom_call.1} parent=1 // pred_check_branch
      %62 = sbr.rel (0) target = $region33
    $region32: #{tpu_custom_call.1} parent=1 // pred_region
      %63 = dma.done [#allocation8], 16384
    $region33: #{tpu_custom_call.1} parent=1 // pred_fallthru
      _
    %64 = sfence
    %s65 = sld [smem:[#allocation2]]
    %s66 = sld [smem:[#allocation2 + $0x1]]
    %s67 = sld [smem:[#allocation2 + $0x2]]
    %s68 = sld [smem:[#allocation2 + $0x3]]
    %s69 = sld [smem:[#allocation2 + $0x4]]
    %s70 = sld [smem:[#allocation2 + $0x5]]
    %v71 = vld [vmem:[#allocation6] sm:$0xff]
    %v72 = vld [vmem:[#allocation6 + $0x8] sm:$0xff]
    %v73 = vld [vmem:[#allocation6 + $0x10] sm:$0xff]
    %v74 = vld [vmem:[#allocation6 + $0x18] sm:$0xff]
    %v75 = vld [vmem:[#allocation6 + $0x20] sm:$0xff]
    %v76 = vld [vmem:[#allocation6 + $0x28] sm:$0xff]
    %v77 = vld [vmem:[#allocation6 + $0x30] sm:$0xff]
    %v78 = vld [vmem:[#allocation6 + $0x38] sm:$0xff]
    %v79 = vld [vmem:[#allocation7] sm:$0xff]
    %v80 = vld [vmem:[#allocation7 + $0x8] sm:$0xff]
    %v81 = vld [vmem:[#allocation7 + $0x10] sm:$0xff]
    %v82 = vld [vmem:[#allocation7 + $0x18] sm:$0xff]
    %v83 = vld [vmem:[#allocation7 + $0x20] sm:$0xff]
    %v84 = vld [vmem:[#allocation7 + $0x28] sm:$0xff]
    %v85 = vld [vmem:[#allocation7 + $0x30] sm:$0xff]
    %v86 = vld [vmem:[#allocation7 + $0x38] sm:$0xff]
    %v87 = vld [vmem:[#allocation7 + $0x40] sm:$0xff]
    %v88 = vld [vmem:[#allocation7 + $0x48] sm:$0xff]
    %v89 = vld [vmem:[#allocation7 + $0x50] sm:$0xff]
    %v90 = vld [vmem:[#allocation7 + $0x58] sm:$0xff]
    %v91 = vld [vmem:[#allocation7 + $0x60] sm:$0xff]
    %v92 = vld [vmem:[#allocation7 + $0x68] sm:$0xff]
    %v93 = vld [vmem:[#allocation7 + $0x70] sm:$0xff]
    %v94 = vld [vmem:[#allocation7 + $0x78] sm:$0xff]
    %v95 = vld [vmem:[#allocation7 + $0x80] sm:$0xff]
    %v96 = vld [vmem:[#allocation7 + $0x88] sm:$0xff]
    %v97 = vld [vmem:[#allocation7 + $0x90] sm:$0xff]
    %v98 = vld [vmem:[#allocation7 + $0x98] sm:$0xff]
    %v99 = vld [vmem:[#allocation7 + $0xa0] sm:$0xff]
    %v100 = vld [vmem:[#allocation7 + $0xa8] sm:$0xff]
    %v101 = vld [vmem:[#allocation7 + $0xb0] sm:$0xff]
    %v102 = vld [vmem:[#allocation7 + $0xb8] sm:$0xff]
    %v103 = vld [vmem:[#allocation7 + $0xc0] sm:$0xff]
    %v104 = vld [vmem:[#allocation7 + $0xc8] sm:$0xff]
    %v105 = vld [vmem:[#allocation7 + $0xd0] sm:$0xff]
    %v106 = vld [vmem:[#allocation7 + $0xd8] sm:$0xff]
    %v107 = vld [vmem:[#allocation7 + $0xe0] sm:$0xff]
    %v108 = vld [vmem:[#allocation7 + $0xe8] sm:$0xff]
    %v109 = vld [vmem:[#allocation7 + $0xf0] sm:$0xff]
    %v110 = vld [vmem:[#allocation7 + $0xf8] sm:$0xff]
    %v111 = vld [vmem:[#allocation7 + $0x100] sm:$0xff]
    %v112 = vld [vmem:[#allocation7 + $0x108] sm:$0xff]
    %v113 = vld [vmem:[#allocation7 + $0x110] sm:$0xff]
    %v114 = vld [vmem:[#allocation7 + $0x118] sm:$0xff]
    %v115 = vld [vmem:[#allocation7 + $0x120] sm:$0xff]
    %v116 = vld [vmem:[#allocation7 + $0x128] sm:$0xff]
    %v117 = vld [vmem:[#allocation7 + $0x130] sm:$0xff]
    %v118 = vld [vmem:[#allocation7 + $0x138] sm:$0xff]
    %v119 = vld [vmem:[#allocation7 + $0x140] sm:$0xff]
    %v120 = vld [vmem:[#allocation7 + $0x148] sm:$0xff]
    %v121 = vld [vmem:[#allocation7 + $0x150] sm:$0xff]
    %v122 = vld [vmem:[#allocation7 + $0x158] sm:$0xff]
    %v123 = vld [vmem:[#allocation7 + $0x160] sm:$0xff]
    %v124 = vld [vmem:[#allocation7 + $0x168] sm:$0xff]
    %v125 = vld [vmem:[#allocation7 + $0x170] sm:$0xff]
    %v126 = vld [vmem:[#allocation7 + $0x178] sm:$0xff]
    %v127 = vld [vmem:[#allocation7 + $0x180] sm:$0xff]
    %v128 = vld [vmem:[#allocation7 + $0x188] sm:$0xff]
    %v129 = vld [vmem:[#allocation7 + $0x190] sm:$0xff]
    %v130 = vld [vmem:[#allocation7 + $0x198] sm:$0xff]
    %v131 = vld [vmem:[#allocation7 + $0x1a0] sm:$0xff]
    %v132 = vld [vmem:[#allocation7 + $0x1a8] sm:$0xff]
    %v133 = vld [vmem:[#allocation7 + $0x1b0] sm:$0xff]
    %v134 = vld [vmem:[#allocation7 + $0x1b8] sm:$0xff]
    %v135 = vld [vmem:[#allocation7 + $0x1c0] sm:$0xff]
    %v136 = vld [vmem:[#allocation7 + $0x1c8] sm:$0xff]
    %v137 = vld [vmem:[#allocation7 + $0x1d0] sm:$0xff]
    %v138 = vld [vmem:[#allocation7 + $0x1d8] sm:$0xff]
    %v139 = vld [vmem:[#allocation7 + $0x1e0] sm:$0xff]
    %v140 = vld [vmem:[#allocation7 + $0x1e8] sm:$0xff]
    %v141 = vld [vmem:[#allocation7 + $0x1f0] sm:$0xff]
    %v142 = vld [vmem:[#allocation7 + $0x1f8] sm:$0xff]
    %v143 = vld [vmem:[#allocation7 + $0x200] sm:$0xff]
    %v144 = vld [vmem:[#allocation7 + $0x208] sm:$0xff]
    %v145 = vld [vmem:[#allocation7 + $0x210] sm:$0xff]
    %v146 = vld [vmem:[#allocation7 + $0x218] sm:$0xff]
    %v147 = vld [vmem:[#allocation7 + $0x220] sm:$0xff]
    %v148 = vld [vmem:[#allocation7 + $0x228] sm:$0xff]
    %v149 = vld [vmem:[#allocation7 + $0x230] sm:$0xff]
    %v150 = vld [vmem:[#allocation7 + $0x238] sm:$0xff]
    %v151 = vld [vmem:[#allocation7 + $0x240] sm:$0xff]
    %v152 = vld [vmem:[#allocation7 + $0x248] sm:$0xff]
    %v153 = vld [vmem:[#allocation7 + $0x250] sm:$0xff]
    %v154 = vld [vmem:[#allocation7 + $0x258] sm:$0xff]
    %v155 = vld [vmem:[#allocation7 + $0x260] sm:$0xff]
    %v156 = vld [vmem:[#allocation7 + $0x268] sm:$0xff]
    %v157 = vld [vmem:[#allocation7 + $0x270] sm:$0xff]
    %v158 = vld [vmem:[#allocation7 + $0x278] sm:$0xff]
    %v159 = vld [vmem:[#allocation7 + $0x280] sm:$0xff]
    %v160 = vld [vmem:[#allocation7 + $0x288] sm:$0xff]
    %v161 = vld [vmem:[#allocation7 + $0x290] sm:$0xff]
    %v162 = vld [vmem:[#allocation7 + $0x298] sm:$0xff]
    %v163 = vld [vmem:[#allocation7 + $0x2a0] sm:$0xff]
    %v164 = vld [vmem:[#allocation7 + $0x2a8] sm:$0xff]
    %v165 = vld [vmem:[#allocation7 + $0x2b0] sm:$0xff]
    %v166 = vld [vmem:[#allocation7 + $0x2b8] sm:$0xff]
    %v167 = vld [vmem:[#allocation7 + $0x2c0] sm:$0xff]
    %v168 = vld [vmem:[#allocation7 + $0x2c8] sm:$0xff]
    %v169 = vld [vmem:[#allocation7 + $0x2d0] sm:$0xff]
    %v170 = vld [vmem:[#allocation7 + $0x2d8] sm:$0xff]
    %v171 = vld [vmem:[#allocation7 + $0x2e0] sm:$0xff]
    %v172 = vld [vmem:[#allocation7 + $0x2e8] sm:$0xff]
    %v173 = vld [vmem:[#allocation7 + $0x2f0] sm:$0xff]
    %v174 = vld [vmem:[#allocation7 + $0x2f8] sm:$0xff]
    %v175 = vld [vmem:[#allocation7 + $0x300] sm:$0xff]
    %v176 = vld [vmem:[#allocation7 + $0x308] sm:$0xff]
    %v177 = vld [vmem:[#allocation7 + $0x310] sm:$0xff]
    %v178 = vld [vmem:[#allocation7 + $0x318] sm:$0xff]
    %v179 = vld [vmem:[#allocation7 + $0x320] sm:$0xff]
    %v180 = vld [vmem:[#allocation7 + $0x328] sm:$0xff]
    %v181 = vld [vmem:[#allocation7 + $0x330] sm:$0xff]
    %v182 = vld [vmem:[#allocation7 + $0x338] sm:$0xff]
    %v183 = vld [vmem:[#allocation7 + $0x340] sm:$0xff]
    %v184 = vld [vmem:[#allocation7 + $0x348] sm:$0xff]
    %v185 = vld [vmem:[#allocation7 + $0x350] sm:$0xff]
    %v186 = vld [vmem:[#allocation7 + $0x358] sm:$0xff]
    %v187 = vld [vmem:[#allocation7 + $0x360] sm:$0xff]
    %v188 = vld [vmem:[#allocation7 + $0x368] sm:$0xff]
    %v189 = vld [vmem:[#allocation7 + $0x370] sm:$0xff]
    %v190 = vld [vmem:[#allocation7 + $0x378] sm:$0xff]
    %v191 = vld [vmem:[#allocation7 + $0x380] sm:$0xff]
    %v192 = vld [vmem:[#allocation7 + $0x388] sm:$0xff]
    %v193 = vld [vmem:[#allocation7 + $0x390] sm:$0xff]
    %v194 = vld [vmem:[#allocation7 + $0x398] sm:$0xff]
    %v195 = vld [vmem:[#allocation7 + $0x3a0] sm:$0xff]
    %v196 = vld [vmem:[#allocation7 + $0x3a8] sm:$0xff]
    %v197 = vld [vmem:[#allocation7 + $0x3b0] sm:$0xff]
    %v198 = vld [vmem:[#allocation7 + $0x3b8] sm:$0xff]
    %v199 = vld [vmem:[#allocation7 + $0x3c0] sm:$0xff]
    %v200 = vld [vmem:[#allocation7 + $0x3c8] sm:$0xff]
    %v201 = vld [vmem:[#allocation7 + $0x3d0] sm:$0xff]
    %v202 = vld [vmem:[#allocation7 + $0x3d8] sm:$0xff]
    %v203 = vld [vmem:[#allocation7 + $0x3e0] sm:$0xff]
    %v204 = vld [vmem:[#allocation7 + $0x3e8] sm:$0xff]
    %v205 = vld [vmem:[#allocation7 + $0x3f0] sm:$0xff]
    %v206 = vld [vmem:[#allocation7 + $0x3f8] sm:$0xff]
    %v207 = vld [vmem:[%s3] sm:$0x3]
    %v209 = vlaneseq
    %v210 = vshrl.u32 %v209, 7
    %v211 = vsub.s32 0, %v210
    %v212 = vrot.slane %v207, %v211
    %v213 = vlaneseq
    %v214 = vshrl.u32 %v213, 7
    %v215 = vsub.s32 1, %v214
    %v216 = vrot.slane %v207, %v215
    %v227 = vunpack.c.l.b16 %v71
    %v228 = vunpack.c.h.b16 %v71
    %v229 = vunpack.c.l.b16 %v72
    %v230 = vunpack.c.h.b16 %v72
    %v231 = vunpack.c.l.b16 %v73
    %v232 = vunpack.c.h.b16 %v73
    %v233 = vunpack.c.l.b16 %v74
    %v234 = vunpack.c.h.b16 %v74
    %v235 = vunpack.c.l.b16 %v75
    %v236 = vunpack.c.h.b16 %v75
    %v237 = vunpack.c.l.b16 %v76
    %v238 = vunpack.c.h.b16 %v76
    %v239 = vunpack.c.l.b16 %v77
    %v240 = vunpack.c.h.b16 %v77
    %v241 = vunpack.c.l.b16 %v78
    %v242 = vunpack.c.h.b16 %v78
    %v243 = vpack.c.b16 %v235, %v227
    %v244 = vpack.c.b16 %v236, %v228
    %v245 = vpack.c.b16 %v237, %v229
    %v246 = vpack.c.b16 %v238, %v230
    %v247 = vpack.c.b16 %v239, %v231
    %v248 = vpack.c.b16 %v240, %v232
    %v249 = vpack.c.b16 %v241, %v233
    %v250 = vpack.c.b16 %v242, %v234
    %v387 = vunpack.c.l.b16 %v79
    %v388 = vunpack.c.h.b16 %v79
    %v389 = vunpack.c.l.b16 %v80
    %v390 = vunpack.c.h.b16 %v80
    %v391 = vunpack.c.l.b16 %v81
    %v392 = vunpack.c.h.b16 %v81
    %v393 = vunpack.c.l.b16 %v82
    %v394 = vunpack.c.h.b16 %v82
    %v395 = vunpack.c.l.b16 %v83
    %v396 = vunpack.c.h.b16 %v83
    %v397 = vunpack.c.l.b16 %v84
    %v398 = vunpack.c.h.b16 %v84
    %v399 = vunpack.c.l.b16 %v85
    %v400 = vunpack.c.h.b16 %v85
    %v401 = vunpack.c.l.b16 %v86
    %v402 = vunpack.c.h.b16 %v86
    %v403 = vunpack.c.l.b16 %v87
    %v404 = vunpack.c.h.b16 %v87
    %v405 = vunpack.c.l.b16 %v88
    %v406 = vunpack.c.h.b16 %v88
    %v407 = vunpack.c.l.b16 %v89
    %v408 = vunpack.c.h.b16 %v89
    %v409 = vunpack.c.l.b16 %v90
    %v410 = vunpack.c.h.b16 %v90
    %v411 = vunpack.c.l.b16 %v91
    %v412 = vunpack.c.h.b16 %v91
    %v413 = vunpack.c.l.b16 %v92
    %v414 = vunpack.c.h.b16 %v92
    %v415 = vunpack.c.l.b16 %v93
    %v416 = vunpack.c.h.b16 %v93
    %v417 = vunpack.c.l.b16 %v94
    %v418 = vunpack.c.h.b16 %v94
    %v419 = vunpack.c.l.b16 %v95
    %v420 = vunpack.c.h.b16 %v95
    %v421 = vunpack.c.l.b16 %v96
    %v422 = vunpack.c.h.b16 %v96
    %v423 = vunpack.c.l.b16 %v97
    %v424 = vunpack.c.h.b16 %v97
    %v425 = vunpack.c.l.b16 %v98
    %v426 = vunpack.c.h.b16 %v98
    %v427 = vunpack.c.l.b16 %v99
    %v428 = vunpack.c.h.b16 %v99
    %v429 = vunpack.c.l.b16 %v100
    %v430 = vunpack.c.h.b16 %v100
    %v431 = vunpack.c.l.b16 %v101
    %v432 = vunpack.c.h.b16 %v101
    %v433 = vunpack.c.l.b16 %v102
    %v434 = vunpack.c.h.b16 %v102
    %v435 = vunpack.c.l.b16 %v103
    %v436 = vunpack.c.h.b16 %v103
    %v437 = vunpack.c.l.b16 %v104
    %v438 = vunpack.c.h.b16 %v104
    %v439 = vunpack.c.l.b16 %v105
    %v440 = vunpack.c.h.b16 %v105
    %v441 = vunpack.c.l.b16 %v106
    %v442 = vunpack.c.h.b16 %v106
    %v443 = vunpack.c.l.b16 %v107
    %v444 = vunpack.c.h.b16 %v107
    %v445 = vunpack.c.l.b16 %v108
    %v446 = vunpack.c.h.b16 %v108
    %v447 = vunpack.c.l.b16 %v109
    %v448 = vunpack.c.h.b16 %v109
    %v449 = vunpack.c.l.b16 %v110
    %v450 = vunpack.c.h.b16 %v110
    %v451 = vunpack.c.l.b16 %v111
    %v452 = vunpack.c.h.b16 %v111
    %v453 = vunpack.c.l.b16 %v112
    %v454 = vunpack.c.h.b16 %v112
    %v455 = vunpack.c.l.b16 %v113
    %v456 = vunpack.c.h.b16 %v113
    %v457 = vunpack.c.l.b16 %v114
    %v458 = vunpack.c.h.b16 %v114
    %v459 = vunpack.c.l.b16 %v115
    %v460 = vunpack.c.h.b16 %v115
    %v461 = vunpack.c.l.b16 %v116
    %v462 = vunpack.c.h.b16 %v116
    %v463 = vunpack.c.l.b16 %v117
    %v464 = vunpack.c.h.b16 %v117
    %v465 = vunpack.c.l.b16 %v118
    %v466 = vunpack.c.h.b16 %v118
    %v467 = vunpack.c.l.b16 %v119
    %v468 = vunpack.c.h.b16 %v119
    %v469 = vunpack.c.l.b16 %v120
    %v470 = vunpack.c.h.b16 %v120
    %v471 = vunpack.c.l.b16 %v121
    %v472 = vunpack.c.h.b16 %v121
    %v473 = vunpack.c.l.b16 %v122
    %v474 = vunpack.c.h.b16 %v122
    %v475 = vunpack.c.l.b16 %v123
    %v476 = vunpack.c.h.b16 %v123
    %v477 = vunpack.c.l.b16 %v124
    %v478 = vunpack.c.h.b16 %v124
    %v479 = vunpack.c.l.b16 %v125
    %v480 = vunpack.c.h.b16 %v125
    %v481 = vunpack.c.l.b16 %v126
    %v482 = vunpack.c.h.b16 %v126
    %v483 = vunpack.c.l.b16 %v127
    %v484 = vunpack.c.h.b16 %v127
    %v485 = vunpack.c.l.b16 %v128
    %v486 = vunpack.c.h.b16 %v128
    %v487 = vunpack.c.l.b16 %v129
    %v488 = vunpack.c.h.b16 %v129
    %v489 = vunpack.c.l.b16 %v130
    %v490 = vunpack.c.h.b16 %v130
    %v491 = vunpack.c.l.b16 %v131
    %v492 = vunpack.c.h.b16 %v131
    %v493 = vunpack.c.l.b16 %v132
    %v494 = vunpack.c.h.b16 %v132
    %v495 = vunpack.c.l.b16 %v133
    %v496 = vunpack.c.h.b16 %v133
    %v497 = vunpack.c.l.b16 %v134
    %v498 = vunpack.c.h.b16 %v134
    %v499 = vunpack.c.l.b16 %v135
    %v500 = vunpack.c.h.b16 %v135
    %v501 = vunpack.c.l.b16 %v136
    %v502 = vunpack.c.h.b16 %v136
    %v503 = vunpack.c.l.b16 %v137
    %v504 = vunpack.c.h.b16 %v137
    %v505 = vunpack.c.l.b16 %v138
    %v506 = vunpack.c.h.b16 %v138
    %v507 = vunpack.c.l.b16 %v139
    %v508 = vunpack.c.h.b16 %v139
    %v509 = vunpack.c.l.b16 %v140
    %v510 = vunpack.c.h.b16 %v140
    %v511 = vunpack.c.l.b16 %v141
    %v512 = vunpack.c.h.b16 %v141
    %v513 = vunpack.c.l.b16 %v142
    %v514 = vunpack.c.h.b16 %v142
    %v515 = vunpack.c.l.b16 %v143
    %v516 = vunpack.c.h.b16 %v143
    %v517 = vunpack.c.l.b16 %v144
    %v518 = vunpack.c.h.b16 %v144
    %v519 = vunpack.c.l.b16 %v145
    %v520 = vunpack.c.h.b16 %v145
    %v521 = vunpack.c.l.b16 %v146
    %v522 = vunpack.c.h.b16 %v146
    %v523 = vunpack.c.l.b16 %v147
    %v524 = vunpack.c.h.b16 %v147
    %v525 = vunpack.c.l.b16 %v148
    %v526 = vunpack.c.h.b16 %v148
    %v527 = vunpack.c.l.b16 %v149
    %v528 = vunpack.c.h.b16 %v149
    %v529 = vunpack.c.l.b16 %v150
    %v530 = vunpack.c.h.b16 %v150
    %v531 = vunpack.c.l.b16 %v151
    %v532 = vunpack.c.h.b16 %v151
    %v533 = vunpack.c.l.b16 %v152
    %v534 = vunpack.c.h.b16 %v152
    %v535 = vunpack.c.l.b16 %v153
    %v536 = vunpack.c.h.b16 %v153
    %v537 = vunpack.c.l.b16 %v154
    %v538 = vunpack.c.h.b16 %v154
    %v539 = vunpack.c.l.b16 %v155
    %v540 = vunpack.c.h.b16 %v155
    %v541 = vunpack.c.l.b16 %v156
    %v542 = vunpack.c.h.b16 %v156
    %v543 = vunpack.c.l.b16 %v157
    %v544 = vunpack.c.h.b16 %v157
    %v545 = vunpack.c.l.b16 %v158
    %v546 = vunpack.c.h.b16 %v158
    %v547 = vunpack.c.l.b16 %v159
    %v548 = vunpack.c.h.b16 %v159
    %v549 = vunpack.c.l.b16 %v160
    %v550 = vunpack.c.h.b16 %v160
    %v551 = vunpack.c.l.b16 %v161
    %v552 = vunpack.c.h.b16 %v161
    %v553 = vunpack.c.l.b16 %v162
    %v554 = vunpack.c.h.b16 %v162
    %v555 = vunpack.c.l.b16 %v163
    %v556 = vunpack.c.h.b16 %v163
    %v557 = vunpack.c.l.b16 %v164
    %v558 = vunpack.c.h.b16 %v164
    %v559 = vunpack.c.l.b16 %v165
    %v560 = vunpack.c.h.b16 %v165
    %v561 = vunpack.c.l.b16 %v166
    %v562 = vunpack.c.h.b16 %v166
    %v563 = vunpack.c.l.b16 %v167
    %v564 = vunpack.c.h.b16 %v167
    %v565 = vunpack.c.l.b16 %v168
    %v566 = vunpack.c.h.b16 %v168
    %v567 = vunpack.c.l.b16 %v169
    %v568 = vunpack.c.h.b16 %v169
    %v569 = vunpack.c.l.b16 %v170
    %v570 = vunpack.c.h.b16 %v170
    %v571 = vunpack.c.l.b16 %v171
    %v572 = vunpack.c.h.b16 %v171
    %v573 = vunpack.c.l.b16 %v172
    %v574 = vunpack.c.h.b16 %v172
    %v575 = vunpack.c.l.b16 %v173
    %v576 = vunpack.c.h.b16 %v173
    %v577 = vunpack.c.l.b16 %v174
    %v578 = vunpack.c.h.b16 %v174
    %v579 = vunpack.c.l.b16 %v175
    %v580 = vunpack.c.h.b16 %v175
    %v581 = vunpack.c.l.b16 %v176
    %v582 = vunpack.c.h.b16 %v176
    %v583 = vunpack.c.l.b16 %v177
    %v584 = vunpack.c.h.b16 %v177
    %v585 = vunpack.c.l.b16 %v178
    %v586 = vunpack.c.h.b16 %v178
    %v587 = vunpack.c.l.b16 %v179
    %v588 = vunpack.c.h.b16 %v179
    %v589 = vunpack.c.l.b16 %v180
    %v590 = vunpack.c.h.b16 %v180
    %v591 = vunpack.c.l.b16 %v181
    %v592 = vunpack.c.h.b16 %v181
    %v593 = vunpack.c.l.b16 %v182
    %v594 = vunpack.c.h.b16 %v182
    %v595 = vunpack.c.l.b16 %v183
    %v596 = vunpack.c.h.b16 %v183
    %v597 = vunpack.c.l.b16 %v184
    %v598 = vunpack.c.h.b16 %v184
    %v599 = vunpack.c.l.b16 %v185
    %v600 = vunpack.c.h.b16 %v185
    %v601 = vunpack.c.l.b16 %v186
    %v602 = vunpack.c.h.b16 %v186
    %v603 = vunpack.c.l.b16 %v187
    %v604 = vunpack.c.h.b16 %v187
    %v605 = vunpack.c.l.b16 %v188
    %v606 = vunpack.c.h.b16 %v188
    %v607 = vunpack.c.l.b16 %v189
    %v608 = vunpack.c.h.b16 %v189
    %v609 = vunpack.c.l.b16 %v190
    %v610 = vunpack.c.h.b16 %v190
    %v611 = vunpack.c.l.b16 %v191
    %v612 = vunpack.c.h.b16 %v191
    %v613 = vunpack.c.l.b16 %v192
    %v614 = vunpack.c.h.b16 %v192
    %v615 = vunpack.c.l.b16 %v193
    %v616 = vunpack.c.h.b16 %v193
    %v617 = vunpack.c.l.b16 %v194
    %v618 = vunpack.c.h.b16 %v194
    %v619 = vunpack.c.l.b16 %v195
    %v620 = vunpack.c.h.b16 %v195
    %v621 = vunpack.c.l.b16 %v196
    %v622 = vunpack.c.h.b16 %v196
    %v623 = vunpack.c.l.b16 %v197
    %v624 = vunpack.c.h.b16 %v197
    %v625 = vunpack.c.l.b16 %v198
    %v626 = vunpack.c.h.b16 %v198
    %v627 = vunpack.c.l.b16 %v199
    %v628 = vunpack.c.h.b16 %v199
    %v629 = vunpack.c.l.b16 %v200
    %v630 = vunpack.c.h.b16 %v200
    %v631 = vunpack.c.l.b16 %v201
    %v632 = vunpack.c.h.b16 %v201
    %v633 = vunpack.c.l.b16 %v202
    %v634 = vunpack.c.h.b16 %v202
    %v635 = vunpack.c.l.b16 %v203
    %v636 = vunpack.c.h.b16 %v203
    %v637 = vunpack.c.l.b16 %v204
    %v638 = vunpack.c.h.b16 %v204
    %v639 = vunpack.c.l.b16 %v205
    %v640 = vunpack.c.h.b16 %v205
    %v641 = vunpack.c.l.b16 %v206
    %v642 = vunpack.c.h.b16 %v206
    %v643 = vpack.c.b16 %v389, %v387
    %v644 = vpack.c.b16 %v390, %v388
    %v645 = vpack.c.b16 %v393, %v391
    %v646 = vpack.c.b16 %v394, %v392
    %v647 = vpack.c.b16 %v397, %v395
    %v648 = vpack.c.b16 %v398, %v396
    %v649 = vpack.c.b16 %v401, %v399
    %v650 = vpack.c.b16 %v402, %v400
    %v651 = vpack.c.b16 %v405, %v403
    %v652 = vpack.c.b16 %v406, %v404
    %v653 = vpack.c.b16 %v409, %v407
    %v654 = vpack.c.b16 %v410, %v408
    %v655 = vpack.c.b16 %v413, %v411
    %v656 = vpack.c.b16 %v414, %v412
    %v657 = vpack.c.b16 %v417, %v415
    %v658 = vpack.c.b16 %v418, %v416
    %v659 = vpack.c.b16 %v421, %v419
    %v660 = vpack.c.b16 %v422, %v420
    %v661 = vpack.c.b16 %v425, %v423
    %v662 = vpack.c.b16 %v426, %v424
    %v663 = vpack.c.b16 %v429, %v427
    %v664 = vpack.c.b16 %v430, %v428
    %v665 = vpack.c.b16 %v433, %v431
    %v666 = vpack.c.b16 %v434, %v432
    %v667 = vpack.c.b16 %v437, %v435
    %v668 = vpack.c.b16 %v438, %v436
    %v669 = vpack.c.b16 %v441, %v439
    %v670 = vpack.c.b16 %v442, %v440
    %v671 = vpack.c.b16 %v445, %v443
    %v672 = vpack.c.b16 %v446, %v444
    %v673 = vpack.c.b16 %v449, %v447
    %v674 = vpack.c.b16 %v450, %v448
    %v675 = vpack.c.b16 %v453, %v451
    %v676 = vpack.c.b16 %v454, %v452
    %v677 = vpack.c.b16 %v457, %v455
    %v678 = vpack.c.b16 %v458, %v456
    %v679 = vpack.c.b16 %v461, %v459
    %v680 = vpack.c.b16 %v462, %v460
    %v681 = vpack.c.b16 %v465, %v463
    %v682 = vpack.c.b16 %v466, %v464
    %v683 = vpack.c.b16 %v469, %v467
    %v684 = vpack.c.b16 %v470, %v468
    %v685 = vpack.c.b16 %v473, %v471
    %v686 = vpack.c.b16 %v474, %v472
    %v687 = vpack.c.b16 %v477, %v475
    %v688 = vpack.c.b16 %v478, %v476
    %v689 = vpack.c.b16 %v481, %v479
    %v690 = vpack.c.b16 %v482, %v480
    %v691 = vpack.c.b16 %v485, %v483
    %v692 = vpack.c.b16 %v486, %v484
    %v693 = vpack.c.b16 %v489, %v487
    %v694 = vpack.c.b16 %v490, %v488
    %v695 = vpack.c.b16 %v493, %v491
    %v696 = vpack.c.b16 %v494, %v492
    %v697 = vpack.c.b16 %v497, %v495
    %v698 = vpack.c.b16 %v498, %v496
    %v699 = vpack.c.b16 %v501, %v499
    %v700 = vpack.c.b16 %v502, %v500
    %v701 = vpack.c.b16 %v505, %v503
    %v702 = vpack.c.b16 %v506, %v504
    %v703 = vpack.c.b16 %v509, %v507
    %v704 = vpack.c.b16 %v510, %v508
    %v705 = vpack.c.b16 %v513, %v511
    %v706 = vpack.c.b16 %v514, %v512
    %v707 = vpack.c.b16 %v517, %v515
    %v708 = vpack.c.b16 %v518, %v516
    %v709 = vpack.c.b16 %v521, %v519
    %v710 = vpack.c.b16 %v522, %v520
    %v711 = vpack.c.b16 %v525, %v523
    %v712 = vpack.c.b16 %v526, %v524
    %v713 = vpack.c.b16 %v529, %v527
    %v714 = vpack.c.b16 %v530, %v528
    %v715 = vpack.c.b16 %v533, %v531
    %v716 = vpack.c.b16 %v534, %v532
    %v717 = vpack.c.b16 %v537, %v535
    %v718 = vpack.c.b16 %v538, %v536
    %v719 = vpack.c.b16 %v541, %v539
    %v720 = vpack.c.b16 %v542, %v540
    %v721 = vpack.c.b16 %v545, %v543
    %v722 = vpack.c.b16 %v546, %v544
    %v723 = vpack.c.b16 %v549, %v547
    %v724 = vpack.c.b16 %v550, %v548
    %v725 = vpack.c.b16 %v553, %v551
    %v726 = vpack.c.b16 %v554, %v552
    %v727 = vpack.c.b16 %v557, %v555
    %v728 = vpack.c.b16 %v558, %v556
    %v729 = vpack.c.b16 %v561, %v559
    %v730 = vpack.c.b16 %v562, %v560
    %v731 = vpack.c.b16 %v565, %v563
    %v732 = vpack.c.b16 %v566, %v564
    %v733 = vpack.c.b16 %v569, %v567
    %v734 = vpack.c.b16 %v570, %v568
    %v735 = vpack.c.b16 %v573, %v571
    %v736 = vpack.c.b16 %v574, %v572
    %v737 = vpack.c.b16 %v577, %v575
    %v738 = vpack.c.b16 %v578, %v576
    %v739 = vpack.c.b16 %v581, %v579
    %v740 = vpack.c.b16 %v582, %v580
    %v741 = vpack.c.b16 %v585, %v583
    %v742 = vpack.c.b16 %v586, %v584
    %v743 = vpack.c.b16 %v589, %v587
    %v744 = vpack.c.b16 %v590, %v588
    %v745 = vpack.c.b16 %v593, %v591
    %v746 = vpack.c.b16 %v594, %v592
    %v747 = vpack.c.b16 %v597, %v595
    %v748 = vpack.c.b16 %v598, %v596
    %v749 = vpack.c.b16 %v601, %v599
    %v750 = vpack.c.b16 %v602, %v600
    %v751 = vpack.c.b16 %v605, %v603
    %v752 = vpack.c.b16 %v606, %v604
    %v753 = vpack.c.b16 %v609, %v607
    %v754 = vpack.c.b16 %v610, %v608
    %v755 = vpack.c.b16 %v613, %v611
    %v756 = vpack.c.b16 %v614, %v612
    %v757 = vpack.c.b16 %v617, %v615
    %v758 = vpack.c.b16 %v618, %v616
    %v759 = vpack.c.b16 %v621, %v619
    %v760 = vpack.c.b16 %v622, %v620
    %v761 = vpack.c.b16 %v625, %v623
    %v762 = vpack.c.b16 %v626, %v624
    %v763 = vpack.c.b16 %v629, %v627
    %v764 = vpack.c.b16 %v630, %v628
    %v765 = vpack.c.b16 %v633, %v631
    %v766 = vpack.c.b16 %v634, %v632
    %v767 = vpack.c.b16 %v637, %v635
    %v768 = vpack.c.b16 %v638, %v636
    %v769 = vpack.c.b16 %v641, %v639
    %v770 = vpack.c.b16 %v642, %v640
    %899 = vmatprep.subr.bf16.mxu0 %v644
    %900 = vmatpush1.bf16.msra.mxu0 %v643
    %901 = vmatprep.subr.bf16.mxu0 %v646
    %902 = vmatpush1.bf16.msra.mxu0 %v645
    %903 = vmatprep.subr.bf16.mxu0 %v648
    %904 = vmatpush1.bf16.msra.mxu0 %v647
    %905 = vmatprep.subr.bf16.mxu0 %v650
    %906 = vmatpush1.bf16.msra.mxu0 %v649
    %907 = vmatprep.subr.bf16.mxu0 %v652
    %908 = vmatpush1.bf16.msra.mxu0 %v651
    %909 = vmatprep.subr.bf16.mxu0 %v654
    %910 = vmatpush1.bf16.msra.mxu0 %v653
    %911 = vmatprep.subr.bf16.mxu0 %v656
    %912 = vmatpush1.bf16.msra.mxu0 %v655
    %913 = vmatprep.subr.bf16.mxu0 %v658
    %914 = vmatpush1.bf16.msra.mxu0 %v657
    %915 = vmatprep.subr.bf16.mxu0 %v660
    %916 = vmatpush1.bf16.msra.mxu0 %v659
    %917 = vmatprep.subr.bf16.mxu0 %v662
    %918 = vmatpush1.bf16.msra.mxu0 %v661
    %919 = vmatprep.subr.bf16.mxu0 %v664
    %920 = vmatpush1.bf16.msra.mxu0 %v663
    %921 = vmatprep.subr.bf16.mxu0 %v666
    %922 = vmatpush1.bf16.msra.mxu0 %v665
    %923 = vmatprep.subr.bf16.mxu0 %v668
    %924 = vmatpush1.bf16.msra.mxu0 %v667
    %925 = vmatprep.subr.bf16.mxu0 %v670
    %926 = vmatpush1.bf16.msra.mxu0 %v669
    %927 = vmatprep.subr.bf16.mxu0 %v672
    %928 = vmatpush1.bf16.msra.mxu0 %v671
    %929 = vmatprep.subr.bf16.mxu0 %v674
    %930 = vmatpush1.bf16.msra.mxu0 %v673
    %931 = vmatprep.mubr.bf16.mxu0 %v244
    %932 = vmatmul.mubr.bf16.gmra.mrb[0].mxu0 %v243
    %v933 = vpop.f32.mrb[0].mxu0
    %v934 = vadd.f32 %v212, %v933
    %v935 = vpop.f32.mrb[0].mxu0
    %v936 = vadd.f32 %v216, %v935
    %v937 = vpop.f32.mrb[0].mxu0
    %v938 = vadd.f32 %v212, %v937
    %v939 = vpop.f32.mrb[0].mxu0
    %v940 = vadd.f32 %v216, %v939
    %941 = vdwg.mxu0
    %942 = vmatprep.subr.bf16.mxu0 %v676
    %943 = vmatpush1.bf16.msra.mxu0 %v675
    %944 = vmatprep.subr.bf16.mxu0 %v678
    %945 = vmatpush1.bf16.msra.mxu0 %v677
    %946 = vmatprep.subr.bf16.mxu0 %v680
    %947 = vmatpush1.bf16.msra.mxu0 %v679
    %948 = vmatprep.subr.bf16.mxu0 %v682
    %949 = vmatpush1.bf16.msra.mxu0 %v681
    %950 = vmatprep.subr.bf16.mxu0 %v684
    %951 = vmatpush1.bf16.msra.mxu0 %v683
    %952 = vmatprep.subr.bf16.mxu0 %v686
    %953 = vmatpush1.bf16.msra.mxu0 %v685
    %954 = vmatprep.subr.bf16.mxu0 %v688
    %955 = vmatpush1.bf16.msra.mxu0 %v687
    %956 = vmatprep.subr.bf16.mxu0 %v690
    %957 = vmatpush1.bf16.msra.mxu0 %v689
    %958 = vmatprep.subr.bf16.mxu0 %v692
    %959 = vmatpush1.bf16.msra.mxu0 %v691
    %960 = vmatprep.subr.bf16.mxu0 %v694
    %961 = vmatpush1.bf16.msra.mxu0 %v693
    %962 = vmatprep.subr.bf16.mxu0 %v696
    %963 = vmatpush1.bf16.msra.mxu0 %v695
    %964 = vmatprep.subr.bf16.mxu0 %v698
    %965 = vmatpush1.bf16.msra.mxu0 %v697
    %966 = vmatprep.subr.bf16.mxu0 %v700
    %967 = vmatpush1.bf16.msra.mxu0 %v699
    %968 = vmatprep.subr.bf16.mxu0 %v702
    %969 = vmatpush1.bf16.msra.mxu0 %v701
    %970 = vmatprep.subr.bf16.mxu0 %v704
    %971 = vmatpush1.bf16.msra.mxu0 %v703
    %972 = vmatprep.subr.bf16.mxu0 %v706
    %973 = vmatpush1.bf16.msra.mxu0 %v705
    %974 = vmatprep.mubr.bf16.mxu0 %v246
    %975 = vmatmul.mubr.bf16.gmra.mrb[0].mxu0 %v245
    %v976 = vpop.f32.mrb[0].mxu0
    %v977 = vadd.f32 %v934, %v976
    %v978 = vpop.f32.mrb[0].mxu0
    %v979 = vadd.f32 %v936, %v978
    %v980 = vpop.f32.mrb[0].mxu0
    %v981 = vadd.f32 %v938, %v980
    %v982 = vpop.f32.mrb[0].mxu0
    %v983 = vadd.f32 %v940, %v982
    %984 = vdwg.mxu0
    %985 = vmatprep.subr.bf16.mxu0 %v708
    %986 = vmatpush1.bf16.msra.mxu0 %v707
    %987 = vmatprep.subr.bf16.mxu0 %v710
    %988 = vmatpush1.bf16.msra.mxu0 %v709
    %989 = vmatprep.subr.bf16.mxu0 %v712
    %990 = vmatpush1.bf16.msra.mxu0 %v711
    %991 = vmatprep.subr.bf16.mxu0 %v714
    %992 = vmatpush1.bf16.msra.mxu0 %v713
    %993 = vmatprep.subr.bf16.mxu0 %v716
    %994 = vmatpush1.bf16.msra.mxu0 %v715
    %995 = vmatprep.subr.bf16.mxu0 %v718
    %996 = vmatpush1.bf16.msra.mxu0 %v717
    %997 = vmatprep.subr.bf16.mxu0 %v720
    %998 = vmatpush1.bf16.msra.mxu0 %v719
    %999 = vmatprep.subr.bf16.mxu0 %v722
    %1000 = vmatpush1.bf16.msra.mxu0 %v721
    %1001 = vmatprep.subr.bf16.mxu0 %v724
    %1002 = vmatpush1.bf16.msra.mxu0 %v723
    %1003 = vmatprep.subr.bf16.mxu0 %v726
    %1004 = vmatpush1.bf16.msra.mxu0 %v725
    %1005 = vmatprep.subr.bf16.mxu0 %v728
    %1006 = vmatpush1.bf16.msra.mxu0 %v727
    %1007 = vmatprep.subr.bf16.mxu0 %v730
    %1008 = vmatpush1.bf16.msra.mxu0 %v729
    %1009 = vmatprep.subr.bf16.mxu0 %v732
    %1010 = vmatpush1.bf16.msra.mxu0 %v731
    %1011 = vmatprep.subr.bf16.mxu0 %v734
    %1012 = vmatpush1.bf16.msra.mxu0 %v733
    %1013 = vmatprep.subr.bf16.mxu0 %v736
    %1014 = vmatpush1.bf16.msra.mxu0 %v735
    %1015 = vmatprep.subr.bf16.mxu0 %v738
    %1016 = vmatpush1.bf16.msra.mxu0 %v737
    %1017 = vmatprep.mubr.bf16.mxu0 %v248
    %1018 = vmatmul.mubr.bf16.gmra.mrb[0].mxu0 %v247
    %v1019 = vpop.f32.mrb[0].mxu0
    %v1020 = vadd.f32 %v977, %v1019
    %v1021 = vpop.f32.mrb[0].mxu0
    %v1022 = vadd.f32 %v979, %v1021
    %v1023 = vpop.f32.mrb[0].mxu0
    %v1024 = vadd.f32 %v981, %v1023
    %v1025 = vpop.f32.mrb[0].mxu0
    %v1026 = vadd.f32 %v983, %v1025
    %1027 = vdwg.mxu0
    %1028 = vmatprep.subr.bf16.mxu0 %v740
    %1029 = vmatpush1.bf16.msra.mxu0 %v739
    %1030 = vmatprep.subr.bf16.mxu0 %v742
    %1031 = vmatpush1.bf16.msra.mxu0 %v741
    %1032 = vmatprep.subr.bf16.mxu0 %v744
    %1033 = vmatpush1.bf16.msra.mxu0 %v743
    %1034 = vmatprep.subr.bf16.mxu0 %v746
    %1035 = vmatpush1.bf16.msra.mxu0 %v745
    %1036 = vmatprep.subr.bf16.mxu0 %v748
    %1037 = vmatpush1.bf16.msra.mxu0 %v747
    %1038 = vmatprep.subr.bf16.mxu0 %v750
    %1039 = vmatpush1.bf16.msra.mxu0 %v749
    %1040 = vmatprep.subr.bf16.mxu0 %v752
    %1041 = vmatpush1.bf16.msra.mxu0 %v751
    %1042 = vmatprep.subr.bf16.mxu0 %v754
    %1043 = vmatpush1.bf16.msra.mxu0 %v753
    %1044 = vmatprep.subr.bf16.mxu0 %v756
    %1045 = vmatpush1.bf16.msra.mxu0 %v755
    %1046 = vmatprep.subr.bf16.mxu0 %v758
    %1047 = vmatpush1.bf16.msra.mxu0 %v757
    %1048 = vmatprep.subr.bf16.mxu0 %v760
    %1049 = vmatpush1.bf16.msra.mxu0 %v759
    %1050 = vmatprep.subr.bf16.mxu0 %v762
    %1051 = vmatpush1.bf16.msra.mxu0 %v761
    %1052 = vmatprep.subr.bf16.mxu0 %v764
    %1053 = vmatpush1.bf16.msra.mxu0 %v763
    %1054 = vmatprep.subr.bf16.mxu0 %v766
    %1055 = vmatpush1.bf16.msra.mxu0 %v765
    %1056 = vmatprep.subr.bf16.mxu0 %v768
    %1057 = vmatpush1.bf16.msra.mxu0 %v767
    %1058 = vmatprep.subr.bf16.mxu0 %v770
    %1059 = vmatpush1.bf16.msra.mxu0 %v769
    %1060 = vmatprep.mubr.bf16.mxu0 %v250
    %1061 = vmatmul.mubr.bf16.gmra.mrb[0].mxu0 %v249
    %v1062 = vpop.f32.mrb[0].mxu0
    %v1063 = vadd.f32 %v1020, %v1062
    %v1064 = vpop.f32.mrb[0].mxu0
    %v1065 = vadd.f32 %v1022, %v1064
    %v1066 = vpop.f32.mrb[0].mxu0
    %v1067 = vadd.f32 %v1024, %v1066
    %v1068 = vpop.f32.mrb[0].mxu0
    %v1069 = vadd.f32 %v1026, %v1068
    %1070 = vdwg.mxu0
    %1071 = vst [vmem:[#allocation10] sm:$0xff] %v1065
    %1072 = vst [vmem:[#allocation10 + $0x8] sm:$0xff] %v1069
    %v1073 = vld [vmem:[%s4] sm:$0xff]
    %v1074 = vld [vmem:[%s4 + $0x8] sm:$0xff]
    %v1075 = vlaneseq
    %v1076 = vand.u32 %v1075, 127
    %1077 = vset.pattern.permute.xlu0 0
    %1078 = vperm.xlu0 %1077, %v1073
    %v1079 = vpop.permute.xlu0 %1078
    %1080 = vset.pattern.permute.xlu0 0
    %1081 = vperm.xlu0 %1080, %v1074
    %v1082 = vpop.permute.xlu0 %1081
    %vm1083 = vcmp.eq.s32.totalorder %v1076, %v1079
    %vm1084 = vcmp.eq.s32.totalorder %v1076, %v1082
    %v1085 = vsel %vm1083, 1, 0
    %v1086 = vsel %vm1084, 1, 0
    %v1087 = vcvt.s32.f32 %v1085
    %v1088 = vcvt.s32.f32 %v1086
    %vm1089 = vcmp.ge.s32.totalorder %v1073, 0
    %vm1090 = vcmp.ge.s32.totalorder %v1074, 0
    %v1091 = vsel %vm1089, 1, 0
    %v1092 = vsel %vm1090, 1, 0
    %v1093 = vcvt.s32.f32 %v1091
    %v1094 = vcvt.s32.f32 %v1092
    %v1095 = vsub.f32 1.0, %v1087
    %v1096 = vsub.f32 1.0, %v1088
    %1098 = vset.pattern.permute.xlu0 0
    %1099 = vperm.xlu0 %1098, %v1093
    %v1100 = vpop.permute.xlu0 %1099
    %1103 = vset.pattern.permute.xlu0 0
    %1104 = vperm.xlu0 %1103, %v1094
    %v1105 = vpop.permute.xlu0 %1104
    %v1107 = vmul.f32 %v1095, %v1100
    %v1108 = vmul.f32 %v1096, %v1105
    %1109 = vmax.xlane.f32.xlu0 %v1065
    %v1110 = vpop.xlane.xlu0 %1109
    %1111 = vmax.xlane.f32.xlu0 %v1069
    %v1112 = vpop.xlane.xlu0 %1111
    %v1113 = vsub.f32 %v1065, %v1110
    %v1114 = vsub.f32 %v1069, %v1112
    %v1115 = vmul.f32 %v1113, 1.442695
    %v1116 = vpow.pop %v1115
    %v1117 = vmul.f32 %v1114, 1.442695
    %v1118 = vpow.pop %v1117
    %1119 = vadd.xlane.f32.xlu0 %v1116
    %v1120 = vpop.xlane.xlu0 %1119
    %1121 = vadd.xlane.f32.xlu0 %v1118
    %v1122 = vpop.xlane.xlu0 %1121
    %v1123 = vlog2.pop %v1120
    %v1124 = vmul.f32 %v1123, 0.6931472
    %v1125 = vlog2.pop %v1122
    %v1126 = vmul.f32 %v1125, 0.6931472
    %v1127 = vsub.f32 %v1113, %v1124
    %v1128 = vsub.f32 %v1114, %v1126
    %v1129 = vmul.f32 %v1127, %v1087
    %v1130 = vmul.f32 %v1128, %v1088
    %v1131 = vadd.f32 %v1129, %v1130
    %1132 = vadd.xlane.f32.xlu0 %v1131
    %v1133 = vpop.xlane.xlu0 %1132
    %v1134 = vrot.slane %v1133, 4
    %v1135 = vadd.f32 %v1133, %v1134
    %v1136 = vrot.slane %v1135, 2
    %v1137 = vadd.f32 %v1135, %v1136
    %v1138 = vrot.slane %v1137, 1
    %v1139 = vadd.f32 %v1137, %v1138
    %s1140 = vtos %v1139
    %s1141 = ssub.f32 0.0, %s1140
    %v1142 = vstv %s68
    %v1143 = vrcp.pop %v1142
    %s1144 = vtos %v1143
    %s1145 = smul.f32 %s68, %s68
    %v1146 = vstv %s1144
    %v1147 = vmul.f32 %v1065, %v1146
    %v1148 = vmul.f32 %v1069, %v1146
    %1149 = vmax.xlane.f32.xlu0 %v1147
    %v1150 = vpop.xlane.xlu0 %1149
    %1151 = vmax.xlane.f32.xlu0 %v1148
    %v1152 = vpop.xlane.xlu0 %1151
    %v1153 = vsub.f32 %v1147, %v1150
    %v1154 = vsub.f32 %v1148, %v1152
    %v1155 = vmul.f32 %v1153, 1.442695
    %v1156 = vpow.pop %v1155
    %v1157 = vmul.f32 %v1154, 1.442695
    %v1158 = vpow.pop %v1157
    %1159 = vadd.xlane.f32.xlu0 %v1156
    %v1160 = vpop.xlane.xlu0 %1159
    %1161 = vadd.xlane.f32.xlu0 %v1158
    %v1162 = vpop.xlane.xlu0 %1161
    %v1163 = vlog2.pop %v1160
    %v1164 = vmul.f32 %v1163, 0.6931472
    %v1165 = vlog2.pop %v1162
    %v1166 = vmul.f32 %v1165, 0.6931472
    %v1167 = vsub.f32 %v1153, %v1164
    %v1168 = vsub.f32 %v1154, %v1166
    %v1169 = vmul.f32 %v1063, %v1146
    %v1170 = vmul.f32 %v1067, %v1146
    %1171 = vmax.xlane.f32.xlu0 %v1169
    %v1172 = vpop.xlane.xlu0 %1171
    %1173 = vmax.xlane.f32.xlu0 %v1170
    %v1174 = vpop.xlane.xlu0 %1173
    %v1175 = vsub.f32 %v1169, %v1172
    %v1176 = vsub.f32 %v1170, %v1174
    %v1177 = vmul.f32 %v1175, 1.442695
    %v1178 = vpow.pop %v1177
    %v1179 = vmul.f32 %v1176, 1.442695
    %v1180 = vpow.pop %v1179
    %1181 = vadd.xlane.f32.xlu0 %v1178
    %v1182 = vpop.xlane.xlu0 %1181
    %1183 = vadd.xlane.f32.xlu0 %v1180
    %v1184 = vpop.xlane.xlu0 %1183
    %v1185 = vlog2.pop %v1182
    %v1186 = vmul.f32 %v1185, 0.6931472
    %v1187 = vlog2.pop %v1184
    %v1188 = vmul.f32 %v1187, 0.6931472
    %v1189 = vsub.f32 %v1175, %v1186
    %v1190 = vsub.f32 %v1176, %v1188
    %v1191 = vmul.f32 %v1167, 1.442695
    %v1192 = vpow.pop %v1191
    %v1193 = vmul.f32 %v1168, 1.442695
    %v1194 = vpow.pop %v1193
    %v1195 = vmul.f32 %v1189, 1.442695
    %v1196 = vpow.pop %v1195
    %v1197 = vmul.f32 %v1190, 1.442695
    %v1198 = vpow.pop %v1197
    %v1199 = vmul.f32 %v1192, %v1087
    %v1200 = vmul.f32 %v1194, %v1088
    %1201 = vadd.xlane.f32.xlu0 %v1199
    %v1202 = vpop.xlane.xlu0 %1201
    %1203 = vadd.xlane.f32.xlu0 %v1200
    %v1204 = vpop.xlane.xlu0 %1203
    %v1205 = vmul.f32 %v1192, %v1107
    %v1206 = vmul.f32 %v1194, %v1108
    %1207 = vadd.xlane.f32.xlu0 %v1205
    %v1208 = vpop.xlane.xlu0 %1207
    %1209 = vadd.xlane.f32.xlu0 %v1206
    %v1210 = vpop.xlane.xlu0 %1209
    %v1211 = vmul.f32 %v1196, %v1087
    %v1212 = vmul.f32 %v1198, %v1088
    %1213 = vadd.xlane.f32.xlu0 %v1211
    %v1214 = vpop.xlane.xlu0 %1213
    %1215 = vadd.xlane.f32.xlu0 %v1212
    %v1216 = vpop.xlane.xlu0 %1215
    %v1217 = vmul.f32 %v1196, %v1107
    %v1218 = vmul.f32 %v1198, %v1108
    %1219 = vadd.xlane.f32.xlu0 %v1217
    %v1220 = vpop.xlane.xlu0 %1219
    %1221 = vadd.xlane.f32.xlu0 %v1218
    %v1222 = vpop.xlane.xlu0 %1221
    %v1223 = vmax.f32 %v1214, 1e-30
    %v1224 = vmax.f32 %v1216, 1e-30
    %v1225 = vlog2.pop %v1223
    %v1226 = vmul.f32 %v1225, 0.6931472
    %v1227 = vlog2.pop %v1224
    %v1228 = vmul.f32 %v1227, 0.6931472
    %v1229 = vmax.f32 %v1202, 1e-30
    %v1230 = vmax.f32 %v1204, 1e-30
    %v1231 = vlog2.pop %v1229
    %v1232 = vmul.f32 %v1231, 0.6931472
    %v1233 = vlog2.pop %v1230
    %v1234 = vmul.f32 %v1233, 0.6931472
    %v1235 = vsub.f32 %v1226, %v1232
    %v1236 = vsub.f32 %v1228, %v1234
    %v1237 = vmul.f32 %v1214, %v1235
    %v1238 = vmul.f32 %v1216, %v1236
    %vm1239 = vcmask 7168
    %v1240 = vsel %vm1239, %v1237, 0.0
    %v1241 = vsel %vm1239, %v1238, 0.0
    %v1242 = vadd.f32 %v1240, %v1241
    %1243 = vadd.xlane.f32.xlu0 %v1242
    %v1244 = vpop.xlane.xlu0 %1243
    %v1245 = vrot.slane %v1244, 4
    %v1246 = vadd.f32 %v1244, %v1245
    %v1247 = vrot.slane %v1246, 2
    %v1248 = vadd.f32 %v1246, %v1247
    %v1249 = vrot.slane %v1248, 1
    %v1250 = vadd.f32 %v1248, %v1249
    %s1251 = vtos %v1250
    %v1252 = vmax.f32 %v1220, 1e-30
    %v1253 = vmax.f32 %v1222, 1e-30
    %v1254 = vlog2.pop %v1252
    %v1255 = vmul.f32 %v1254, 0.6931472
    %v1256 = vlog2.pop %v1253
    %v1257 = vmul.f32 %v1256, 0.6931472
    %v1258 = vmax.f32 %v1208, 1e-30
    %v1259 = vmax.f32 %v1210, 1e-30
    %v1260 = vlog2.pop %v1258
    %v1261 = vmul.f32 %v1260, 0.6931472
    %v1262 = vlog2.pop %v1259
    %v1263 = vmul.f32 %v1262, 0.6931472
    %v1264 = vsub.f32 %v1255, %v1261
    %v1265 = vsub.f32 %v1257, %v1263
    %v1266 = vmul.f32 %v1220, %v1264
    %v1267 = vmul.f32 %v1222, %v1265
    %v1268 = vsel %vm1239, %v1266, 0.0
    %v1269 = vsel %vm1239, %v1267, 0.0
    %v1270 = vadd.f32 %v1268, %v1269
    %1271 = vadd.xlane.f32.xlu0 %v1270
    %v1272 = vpop.xlane.xlu0 %1271
    %v1273 = vrot.slane %v1272, 4
    %v1274 = vadd.f32 %v1272, %v1273
    %v1275 = vrot.slane %v1274, 2
    %v1276 = vadd.f32 %v1274, %v1275
    %v1277 = vrot.slane %v1276, 1
    %v1278 = vadd.f32 %v1276, %v1277
    %s1279 = vtos %v1278
    %s1280 = sadd.f32 %s1251, %s1279
    %v1281 = vrcp.pop %v1252
    %v1282 = vrcp.pop %v1253
    %v1283 = vmul.f32 %v1217, %v1281
    %v1284 = vmul.f32 %v1218, %v1282
    %v1285 = vsub.f32 %v1189, %v1167
    %v1286 = vsub.f32 %v1190, %v1168
    %v1287 = vsub.f32 %v1285, %v1264
    %v1288 = vsub.f32 %v1286, %v1265
    %v1289 = vmul.f32 %v1283, %v1287
    %v1290 = vmul.f32 %v1284, %v1288
    %v1291 = vadd.f32 %v1289, %v1290
    %1292 = vadd.xlane.f32.xlu0 %v1291
    %v1293 = vpop.xlane.xlu0 %1292
    %v1294 = vrot.slane %v1293, 4
    %v1295 = vadd.f32 %v1293, %v1294
    %v1296 = vrot.slane %v1295, 2
    %v1297 = vadd.f32 %v1295, %v1296
    %v1298 = vrot.slane %v1297, 1
    %v1299 = vadd.f32 %v1297, %v1298
    %s1300 = vtos %v1299
    %s1301 = smul.f32 %s65, %s1141
    %s1302 = smul.f32 %s66, %s1280
    %s1303 = smul.f32 %s67, %s1300
    %s1304 = sadd.f32 %s1302, %s1303
    %s1305 = smul.f32 %s69, %s1304
    %s1306 = smul.f32 %s1305, %s1145
    %s1307 = sadd.f32 %s1301, %s1306
    %s1308 = smul.f32 %s1307, %s70
    %v1309 = vstv %s1308
    %1310 = vst [vmem:[#allocation9] sm:$0xff] %v1309
    // Predicated region
    $region34: #{tpu_custom_call.1} parent=1 // pred_check
      _
    $region35: #{tpu_custom_call.1} parent=1 // pred_check_branch
      %1312 = sbr.rel (0) target = $region37
    $region36: #{tpu_custom_call.1} parent=1 // pred_region
      %s1314 = ssub.s32 128, 128
      %1315 = vsyncadd [#allocation4], %s1314
      %s1317 = sshll.u32 [#allocation9], 4
      %s1318 = int_to_ptr.vmem [resolvable:$true] %s1317
      %1320 = dma.vmem_to_hbm [thread:$0]  %s1318, 128, %s5, [#allocation4]
    $region37: #{tpu_custom_call.1} parent=1 // pred_fallthru
      _
    // Predicated region
    $region38: #{tpu_custom_call.1} parent=1 // pred_check
      _
    $region39: #{tpu_custom_call.1} parent=1 // pred_check_branch
      %1322 = sbr.rel (0) target = $region41
    $region40: #{tpu_custom_call.1} parent=1 // pred_region
      %s1324 = ssub.s32 256, 256
      %1325 = vsyncadd [#allocation11], %s1324
      %s1326 = sshll.u32 [#allocation10], 4
      %s1327 = int_to_ptr.vmem [resolvable:$true] %s1326
      %1332 = dma.vmem_to_hbm [thread:$0]  %s1327, 256, %s6, [#allocation11], 128, 128, 8
    $region41: #{tpu_custom_call.1} parent=1 // pred_fallthru
      _
    // Predicated region
    $region42: #{tpu_custom_call.1} parent=1 // pred_check
      _
    $region43: #{tpu_custom_call.1} parent=1 // pred_check_branch
      %1334 = sbr.rel (0) target = $region45
    $region44: #{tpu_custom_call.1} parent=1 // pred_region
      %1335 = dma.done [#allocation4], 128
    $region45: #{tpu_custom_call.1} parent=1 // pred_fallthru
      _
    // Predicated region
    $region46: #{tpu_custom_call.1} parent=1 // pred_check
      _
    $region47: #{tpu_custom_call.1} parent=1 // pred_check_branch
      %1337 = sbr.rel (0) target = $region49
    $region48: #{tpu_custom_call.1} parent=1 // pred_region
      %1338 = dma.done [#allocation11], 256
    $region49: #{tpu_custom_call.1} parent=1 // pred_fallthru
      _
    %1339 = vsyncpa [#allocation3], 1
    %1340 = vsyncpa [#allocation8], 1
    %1341 = vsyncpa [#allocation4], 1
    %1342 = vsyncpa [#allocation11], 1
    %1343 = vsyncpa [#allocation5], 1

</llo_original>
